<compile_context>
chip_gen: v5e
topology: v5e:2x2
jax: 0.10.0
libtpu: 0.0.40
codegen_flags: <defaults>
</compile_context>

<pallas_src>
import functools
import math

import jax
import jax.numpy as jnp
from jax.experimental import pallas as pl
from jax.experimental.pallas import tpu as pltpu

CP = 128           # channel padding (lane width); all activations bf16 with C -> CP
_ALIGN = 16        # sublane alignment used for bf16 blocks
ROW_TARGET = 256   # target rows per M-tile.  Raise to 512-2048 at large feature maps;
                   # keep 2x double-buffered inputs + im2col slab under ~32 MB (v7x).
VMEM_LIMIT = 32 * 1024 * 1024


def _round_up(x, m):
    return ((x + m - 1) // m) * m


# --------------------------------------------------------------------------- #
# The single fused conv kernel: im2col slab in VMEM + one deep-K GEMM
#   + fused bias / residual / (partial) ReLU / top-down merge.
# --------------------------------------------------------------------------- #
def _conv_kernel(offs, mt, relu_skip, relu_flag, pre_add, has_res, has_halo, *refs):
    i = 0
    x_main = refs[i]; i += 1
    x_halo = None
    if has_halo:
        x_halo = refs[i]; i += 1
    x2_main = x2_halo = None
    if pre_add:
        x2_main = refs[i]; i += 1
        if has_halo:
            x2_halo = refs[i]; i += 1
    w_ref = refs[i]; i += 1
    b_ref = refs[i]; i += 1
    res_ref = None
    if has_res:
        res_ref = refs[i]; i += 1
    o_ref = refs[i]

    def rows(main_ref, halo_ref):
        r = main_ref[0]
        if halo_ref is not None:
            r = jnp.concatenate([r, halo_ref[0]], axis=0)
        return r

    full = rows(x_main, x_halo)                      # bf16 (mt [+ halo], K)
    if pre_add:
        # fused TCB top-down merge: relu(x + x_up) feeds this conv
        full = jnp.maximum(full + rows(x2_main, x2_halo), 0.0)

    # im2col slab: taps concatenated along lanes -> one deep-K GEMM on the MXU.
    if len(offs) == 1:
        slab = full[offs[0]:offs[0] + mt]
    else:
        slab = jnp.concatenate([full[off:off + mt] for off in offs], axis=1)

    acc = jnp.dot(slab, w_ref[...], preferred_element_type=jnp.float32)
    acc = acc + b_ref[...]
    if has_res:
        acc = acc + res_ref[0].astype(jnp.float32)
    if relu_flag:
        if relu_skip > 0:
            # fused head+conv1: first `relu_skip` channels stay raw (head logits)
            acc = jnp.concatenate(
                [acc[:, :relu_skip], jnp.maximum(acc[:, relu_skip:], 0.0)], axis=1)
        else:
            acc = jnp.maximum(acc, 0.0)
    o_ref[0] = acc.astype(o_ref.dtype)


def _prep_input(p, x):
    """Spatial pad / stride transform.  Returns (xp, Ho, Wo), xp NHWC bf16."""
    B, H, W, C = x.shape
    kh, kw, pad, stride = p["kh"], p["kw"], p["pad"], p["stride"]
    if stride == 1:
        if pad:
            x = jnp.pad(x, ((0, 0), (pad, pad), (pad, pad), (0, 0)))
        Hp, Wp = x.shape[1], x.shape[2]
        return x, Hp - kh + 1, Wp - kw + 1
    if p["s2d"]:
        s, k0, kt = stride, p["orig_k"], kh
        Ho = (H + 2 * pad - k0) // s + 1
        Wo = (W + 2 * pad - k0) // s + 1
        Hreq, Wreq = s * (Ho + kt - 1), s * (Wo + kt - 1)
        x = jnp.pad(x, ((0, 0), (pad, Hreq - H - pad), (pad, Wreq - W - pad), (0, 0)))
        H2, W2 = Hreq // s, Wreq // s
        x = x.reshape(B, H2, s, W2, s, C).transpose(0, 1, 3, 2, 4, 5)
        x = x.reshape(B, H2, W2, s * s * C)
        return x, Ho, Wo
    # 1x1 stride-s conv == subsample + GEMM
    if pad:
        x = jnp.pad(x, ((0, 0), (pad, pad), (pad, pad), (0, 0)))
    x = x[:, ::stride, ::stride, :]
    return x, x.shape[1], x.shape[2]


def apply_conv(p, x, relu=False, x2=None, residual=None, relu_skip=0,
               row_target=ROW_TARGET):
    """Fused conv.  x: (B,H,W,Cp) bf16 -> (B,Ho,Wo,N) bf16.

    x2       : optional second input; kernel computes relu(x + x2) first.
    residual : optional tensor added in the GEMM epilogue (before ReLU).
    relu_skip: with relu=True, leave the first `relu_skip` output channels raw.
    """
    xp, Ho, Wo = _prep_input(p, x)
    B, Hp, Wp, K = xp.shape
    TK, N = p["w"].shape
    kh, kw = p["kh"], p["kw"]
    assert TK == kh * kw * K

    offs = tuple(i * Wp + j for i in range(kh) for j in range(kw))
    halo = max(offs)
    M_need = Ho * Wp
    if halo == 0:
        Hh = 0
        Mt = min(_round_up(M_need, _ALIGN), _round_up(row_target, _ALIGN))
    else:
        Hh = _round_up(halo, _ALIGN)
        Mt = Hh * max(1, row_target // Hh)
        Mt = min(Mt, _round_up(M_need, Hh))
    n_tiles = -(-M_need // Mt)
    M_pad = n_tiles * Mt
    Lx = max(Hp * Wp, M_pad + Hh)
    has_halo = Hh > 0

    def flat(z):
        z = z.reshape(B, Hp * Wp, K)
        if Lx > Hp * Wp:
            z = jnp.pad(z, ((0, 0), (0, Lx - Hp * Wp), (0, 0)))
        return z

    inputs = [flat(xp)]
    in_specs = [pl.BlockSpec((1, Mt, K), lambda b, m: (b, m, 0))]
    if has_halo:
        hb = Mt // Hh
        inputs.append(inputs[0])  # same array, separate halo window
        in_specs.append(pl.BlockSpec((1, Hh, K), lambda b, m, hb=hb: (b, (m + 1) * hb, 0)))

    pre_add = x2 is not None
    if pre_add:
        x2p, _, _ = _prep_input(p, x2)
        x2f = flat(x2p)
        inputs.append(x2f)
        in_specs.append(pl.BlockSpec((1, Mt, K), lambda b, m: (b, m, 0)))
        if has_halo:
            hb = Mt // Hh
            inputs.append(x2f)
            in_specs.append(pl.BlockSpec((1, Hh, K),
                                         lambda b, m, hb=hb: (b, (m + 1) * hb, 0)))

    inputs.append(p["w"])
    in_specs.append(pl.BlockSpec((TK, N), lambda b, m: (0, 0)))
    inputs.append(p["b"].reshape(1, N))
    in_specs.append(pl.BlockSpec((1, N), lambda b, m: (0, 0)))

    has_res = residual is not None
    if has_res:
        r = residual
        if r.shape[2] < Wp:
            r = jnp.pad(r, ((0, 0), (0, 0), (0, Wp - r.shape[2]), (0, 0)))
        r = r.reshape(B, Ho * Wp, N)
        if M_pad > Ho * Wp:
            r = jnp.pad(r, ((0, 0), (0, M_pad - Ho * Wp), (0, 0)))
        inputs.append(r)
        in_specs.append(pl.BlockSpec((1, Mt, N), lambda b, m: (b, m, 0)))

    out = pl.pallas_call(
        functools.partial(_conv_kernel, offs, Mt, relu_skip, relu,
                          pre_add, has_res, has_halo),
        out_shape=jax.ShapeDtypeStruct((B, M_pad, N), jnp.bfloat16),
        grid_spec=pltpu.PrefetchScalarGridSpec(
            num_scalar_prefetch=0,
            grid=(B, n_tiles),
            in_specs=in_specs,
            out_specs=pl.BlockSpec((1, Mt, N), lambda b, m: (b, m, 0)),
        ),
        compiler_params=pltpu.CompilerParams(
            dimension_semantics=("parallel", "parallel"),
            vmem_limit_bytes=VMEM_LIMIT,
        ),
    )(*inputs)

    out = out[:, :Ho * Wp, :].reshape(B, Ho, Wp, N)[:, :, :Wo, :]
    return out


def apply_deconv(p, x):
    """ConvTranspose2d(k=4, s=2, p=1) as one 3x3 phase-embedded conv with 4*CP
    output channels followed by a single reshape/transpose pixel-shuffle."""
    B, H, W, _ = x.shape
    E = apply_conv(p, x)                                   # (B, H, W, 4*CP)
    E = E.reshape(B, H, W, 2, 2, CP)
    E = jnp.transpose(E, (0, 1, 3, 2, 4, 5)).reshape(B, 2 * H, 2 * W, CP)
    return E


# --------------------------------------------------------------------------- #
# Parameter preparation (BN folded, channel-padded, bf16, tap-major flat weights)
# --------------------------------------------------------------------------- #
def _fold_bn(w, gamma, beta, mean, var, eps=1e-5):
    scale = gamma / jnp.sqrt(var + eps)
    return w * scale, beta - mean * scale


def prep_conv(w, b, stride=1, pad=0):
    kh, kw, cin, cout = w.shape
    wP = jnp.zeros((kh, kw, CP, CP), jnp.float32).at[:, :, :cin, :cout].set(w)
    bP = jnp.zeros((CP,), jnp.float32).at[:cout].set(b)
    if stride == 1 or kh == 1:
        wk, khe, kwe, K, s2d = wP, kh, kw, CP, False
    else:
        # stride>1 spatial kernel: pre-build the space-to-depth equivalent weight
        s = stride
        kt = (kh - 1) // s + 1
        K = s * s * CP
        w2 = jnp.zeros((kt, kt, K, CP), jnp.float32)
        for a in range(kt):
            for c in range(kt):
                for p_ in range(s):
                    for q in range(s):
                        i, j = s * a + p_, s * c + q
                        if i < kh and j < kw:
                            blk = (p_ * s + q) * CP
                            w2 = w2.at[a, c, blk:blk + CP, :].set(wP[i, j])
        wk, khe, kwe, s2d = w2, kt, kt, True
    return {
        "w": wk.reshape(khe * kwe * K, CP).astype(jnp.bfloat16),
        "b": bP, "kh": khe, "kw": kwe, "pad": pad, "stride": stride,
        "s2d": s2d, "orig_k": kh, "cout": cout,
    }


def prep_deconv(w, b):
    """ConvTranspose2d(4,4,s=2,p=1) -> equivalent 3x3 conv with 4 phase blocks."""
    _, _, cin, cout = w.shape
    wP = jnp.zeros((4, 4, CP, CP), jnp.float32).at[:, :, :cin, :cout].set(w)
    bP = jnp.zeros((CP,), jnp.float32).at[:cout].set(b)
    wd = jnp.zeros((3, 3, CP, 4 * CP), jnp.float32)
    for r in (0, 1):
        for t in (0, 1):
            blk = (2 * r + t) * CP
            for a in range(3):
                ky = r + 3 - 2 * a
                if not (0 <= ky < 4):
                    continue
                for c in range(3):
                    kx = t + 3 - 2 * c
                    if not (0 <= kx < 4):
                        continue
                    wd = wd.at[a, c, :, blk:blk + CP].set(wP[ky, kx])
    return {
        "w": wd.reshape(9 * CP, 4 * CP).astype(jnp.bfloat16),
        "b": jnp.tile(bP, 4), "kh": 3, "kw": 3, "pad": 1, "stride": 1,
        "s2d": False, "orig_k": 4, "cout": 4 * cout,
    }


def fuse_convs(p1, p2):
    """Fuse two convs that share the same input (and geometry) along N."""
    for k in ("kh", "kw", "pad", "stride", "s2d", "orig_k"):
        assert p1[k] == p2[k]
    return {**p1,
            "w": jnp.concatenate([p1["w"], p2["w"]], axis=1),
            "b": jnp.concatenate([p1["b"], p2["b"]], axis=0),
            "cout": p1["cout"] + p2["cout"]}


class ParamGen:
    def __init__(self, seed=0):
        self.key = jax.random.PRNGKey(seed)

    def _next(self):
        self.key, k = jax.random.split(self.key)
        return k

    def conv_bn(self, kh, kw, cin, cout):
        std = 1.0 / math.sqrt(kh * kw * cin)
        w = jax.random.normal(self._next(), (kh, kw, cin, cout), jnp.float32) * std
        gamma = 1.0 + 0.1 * jax.random.normal(self._next(), (cout,), jnp.float32)
        beta = 0.1 * jax.random.normal(self._next(), (cout,), jnp.float32)
        mean = 0.1 * jax.random.normal(self._next(), (cout,), jnp.float32)
        var = 1.0 + 0.1 * jax.random.uniform(self._next(), (cout,), jnp.float32)
        return _fold_bn(w, gamma, beta, mean, var)

    def conv_bias(self, kh, kw, cin, cout):
        std = 1.0 / math.sqrt(kh * kw * cin)
        w = jax.random.normal(self._next(), (kh, kw, cin, cout), jnp.float32) * std
        b = 0.01 * jax.random.normal(self._next(), (cout,), jnp.float32)
        return w, b


# --------------------------------------------------------------------------- #
# Modules
# --------------------------------------------------------------------------- #
def make_bottleneck(pg, cin, cout, stride, expansion=4):
    cmid = cout // expansion
    p = {}
    p["conv1"] = prep_conv(*pg.conv_bn(1, 1, cin, cmid), stride=1, pad=0)
    p["conv2"] = prep_conv(*pg.conv_bn(3, 3, cmid, cmid), stride=stride, pad=1)
    p["conv3"] = prep_conv(*pg.conv_bn(1, 1, cmid, cout), stride=1, pad=0)
    if stride != 1 or cin != cout:
        p["down"] = prep_conv(*pg.conv_bn(1, 1, cin, cout), stride=stride, pad=0)
    return p


def bottleneck_fwd(p, x):
    h = apply_conv(p["conv1"], x, relu=True)
    h = apply_conv(p["conv2"], h, relu=True)
    identity = apply_conv(p["down"], x) if "down" in p else x
    # conv3 + identity add + ReLU fused into one kernel epilogue
    return apply_conv(p["conv3"], h, relu=True, residual=identity)


def make_tcb(pg, cin, cout, last=False):
    # lite=False -> dense 3x3 convs; attention=None -> identity
    p = {"last": last}
    p["conv1"] = prep_conv(*pg.conv_bn(3, 3, cin, cout), pad=1)
    p["conv2"] = prep_conv(*pg.conv_bn(3, 3, cout, cout), pad=1)
    if not last:
        p["deconv1"] = prep_deconv(*pg.conv_bn(4, 4, cout, cout))
    p["conv3"] = prep_conv(*pg.conv_bn(3, 3, cout, cout), pad=1)
    return p


def tcb_fwd(p, h1, x_next=None):
    """h1 is the (already fused) conv1 output for this level."""
    if p["last"]:
        h = apply_conv(p["conv2"], h1, relu=True)          # relu2 fused into conv2
        return apply_conv(p["conv3"], h, relu=True)
    h = apply_conv(p["conv2"], h1, relu=False)
    up = apply_deconv(p["deconv1"], x_next)
    # relu(h + up) fused into conv3's input stage (no standalone add/relu kernel)
    return apply_conv(p["conv3"], h, relu=True, x2=up)


def split_head(raw_list, num_anchors, num_classes):
    per = 4 + num_classes
    locs, clss = [], []
    for o in raw_list:
        B, H, W, _ = o.shape
        o = o[..., :num_anchors * per].astype(jnp.float32)
        o = o.reshape(B, H * W * num_anchors, per)
        locs.append(o[..., :4])
        clss.append(o[..., 4:])
    return jnp.concatenate(locs, axis=1), jnp.concatenate(clss, axis=1)


# --------------------------------------------------------------------------- #
# RefineDet
# --------------------------------------------------------------------------- #
def make_refinedet(pg, num_anchors=3, num_classes=4, f_channels=32, extra_levels=(6,)):
    params = {"num_anchors": num_anchors, "num_classes": num_classes}
    # tiny synthetic backbone: two conv(BN,ReLU, stride 2) stages, out = [16, 32]
    params["backbone"] = [prep_conv(*pg.conv_bn(3, 3, 3, 16), stride=2, pad=1),
                          prep_conv(*pg.conv_bn(3, 3, 16, 32), stride=2, pad=1)]
    stages = [16, 32]
    params["extra"] = []
    for _ in extra_levels:
        params["extra"].append(make_bottleneck(pg, stages[-1], f_channels, stride=2))
        stages.append(f_channels)
    L = len(stages)
    # refinement (ARM) head: plain 3x3 conv + bias, num_anchors*(4+1) channels
    r_head = [prep_conv(*pg.conv_bias(3, 3, c, num_anchors * 5), pad=1) for c in stages]
    tcbs = [make_tcb(pg, stages[-1], f_channels, last=True)]
    for c in reversed(stages[:-1]):
        tcbs.append(make_tcb(pg, c, f_channels, last=False))
    # Fuse r_head conv i with the TCB conv1 reading the same pyramid level:
    # one kernel per level, one input DMA, N=256 output (head raw | conv1 relu).
    fused = [None] * L
    for j, t in enumerate(tcbs):
        i = L - 1 - j
        fused[i] = fuse_convs(r_head[i], t.pop("conv1"))
    params["fused_head_conv1"] = fused
    params["tcbs"] = tcbs
    params["d_head"] = [prep_conv(*pg.conv_bias(3, 3, f_channels,
                                                num_anchors * (4 + num_classes)), pad=1)
                        for _ in range(L)]
    return params


def refinedet_fwd(params, x_nchw):
    x = jnp.transpose(x_nchw, (0, 2, 3, 1))                          # NCHW -> NHWC
    x = jnp.pad(x, ((0, 0), (0, 0), (0, 0), (0, CP - x.shape[-1])))
    x = x.astype(jnp.bfloat16)                                       # bf16 end-to-end
    cs = []
    h = x
    for cp in params["backbone"]:
        h = apply_conv(cp, h, relu=True)
        cs.append(h)
    for bp in params["extra"]:
        cs.append(bottleneck_fwd(bp, cs[-1]))
    L = len(cs)
    na, nc = params["num_anchors"], params["num_classes"]

    # fused ARM head + TCB conv1 (share the cs[i] DMA; head block is not relu'd)
    r_raw, t1 = [], [None] * L
    for i, c in enumerate(cs):
        o = apply_conv(params["fused_head_conv1"][i], c, relu=True, relu_skip=CP)
        r_raw.append(o[..., :CP])
        t1[i] = o[..., CP:]
    r_loc_p, r_cls_p = split_head(r_raw, na, 1)

    dcs = [tcb_fwd(params["tcbs"][0], t1[L - 1])]
    for j in range(1, L):
        dcs.append(tcb_fwd(params["tcbs"][j], t1[L - 1 - j], dcs[-1]))
    dcs.reverse()

    d_raw = [apply_conv(p, d) for p, d in zip(params["d_head"], dcs)]
    d_loc_p, d_cls_p = split_head(d_raw, na, nc)
    return r_loc_p, r_cls_p, d_loc_p, d_cls_p


# --------------------------------------------------------------------------- #
# Unit check of the fused conv kernel (exercises multi-tile + halo paths)
# --------------------------------------------------------------------------- #
def _check_conv(key, H, W, cin, cout, k, stride, pad, row_target):
    k1, k2, k3 = jax.random.split(key, 3)
    x = jax.random.normal(k1, (2, H, W, cin), jnp.float32)
    w = jax.random.normal(k2, (k, k, cin, cout), jnp.float32) / math.sqrt(k * k * cin)
    b = 0.1 * jax.random.normal(k3, (cout,), jnp.float32)
    p = prep_conv(w, b, stride=stride, pad=pad)
    xb = jnp.pad(x, ((0, 0), (0, 0), (0, 0), (0, CP - cin))).astype(jnp.bfloat16)
    out = apply_conv(p, xb, relu=False, row_target=row_target)
    out = out[..., :cout].astype(jnp.float32)
    xr = xb.astype(jnp.float32)[..., :cin]
    wr = w.astype(jnp.bfloat16).astype(jnp.float32)
    ref = jax.lax.conv_general_dilated(
        xr, wr, window_strides=(stride, stride),
        padding=((pad, pad), (pad, pad)),
        dimension_numbers=("NHWC", "HWIO", "NHWC")) + b
    assert out.shape == ref.shape, (out.shape, ref.shape)
    err = jnp.max(jnp.abs(out - ref))
    assert float(err) < 5e-2, float(err)


# --------------------------------------------------------------------------- #
if __name__ == "__main__":
    # kernel unit checks: 3x3/1x1, stride 1/2, forced small tiles so the
    # M-tiled + halo-block path is exercised end to end.
    ck = jax.random.PRNGKey(1)
    _check_conv(ck, H=24, W=24, cin=16, cout=32, k=3, stride=1, pad=1, row_target=128)
    _check_conv(jax.random.fold_in(ck, 1), 24, 24, 16, 32, k=3, stride=2, pad=1, row_target=64)
    _check_conv(jax.random.fold_in(ck, 2), 24, 24, 16, 32, k=1, stride=1, pad=0, row_target=128)
    _check_conv(jax.random.fold_in(ck, 3), 24, 24, 16, 32, k=1, stride=2, pad=0, row_target=64)

    # full RefineDet forward
    key = jax.random.PRNGKey(0)
    x = jax.random.normal(key, (2, 3, 32, 32), jnp.float32)   # NCHW like PyTorch

    pg = ParamGen(seed=0)
    params = make_refinedet(pg, num_anchors=3, num_classes=4,
                            f_channels=32, extra_levels=(6,))

    fwd = jax.jit(lambda inp: refinedet_fwd(params, inp))
    preds = jax.block_until_ready(fwd(x))

    r_loc_p, r_cls_p, d_loc_p, d_cls_p = preds
    # 3 pyramid levels: 16x16, 8x8, 4x4 -> (256+64+16)*3 anchors = 1008
    assert r_loc_p.shape == (2, 1008, 4), r_loc_p.shape
    assert r_cls_p.shape == (2, 1008, 1), r_cls_p.shape
    assert d_loc_p.shape == (2, 1008, 4), d_loc_p.shape
    assert d_cls_p.shape == (2, 1008, 4), d_cls_p.shape
    assert all(bool(jnp.all(jnp.isfinite(p))) for p in preds)

    print("KERNEL_OK")
</pallas_src>

<mosaic_0001>
module attributes {stable_mosaic.version = 11 : i64} {
  func.func @_conv_kernel(%arg0: i32, %arg1: i32, %arg2: memref<1x128x128xbf16, #tpu.memory_space<vmem>>, %arg3: memref<1x64x128xbf16, #tpu.memory_space<vmem>>, %arg4: memref<1152x128xbf16, #tpu.memory_space<vmem>>, %arg5: memref<1x128xf32, #tpu.memory_space<vmem>>, %arg6: memref<1x128x128xbf16, #tpu.memory_space<vmem>>) attributes {dimension_semantics = [#tpu.dimension_semantics<parallel>, #tpu.dimension_semantics<parallel>], iteration_bounds = array<i64: 2, 5>, scalar_prefetch = 0 : i64, scratch_operands = 0 : i64, tpu.core_type = #tpu.core_type<tc>, window_params = [{transform_indices = @transform_0, window_bounds = array<i64: 1, 128, 128>}, {transform_indices = @transform_1, window_bounds = array<i64: 1, 64, 128>}, {pipeline_mode = #tpu.pipeline_mode<synchronous>, transform_indices = @transform_2, window_bounds = array<i64: 1152, 128>}, {pipeline_mode = #tpu.pipeline_mode<synchronous>, transform_indices = @transform_3, window_bounds = array<i64: 1, 128>}, {transform_indices = @transform_4, window_bounds = array<i64: 1, 128, 128>}]} {
    %c0 = arith.constant 0 : index
    %c0_0 = arith.constant 0 : index
    %c0_1 = arith.constant 0 : index
    %0 = vector.load %arg2[%c0, %c0_0, %c0_1] : memref<1x128x128xbf16, #tpu.memory_space<vmem>>, vector<1x128x128xbf16>
    %1 = vector.shape_cast %0 : vector<1x128x128xbf16> to vector<128x128xbf16>
    %c0_2 = arith.constant 0 : index
    %c0_3 = arith.constant 0 : index
    %c0_4 = arith.constant 0 : index
    %2 = vector.load %arg3[%c0_2, %c0_3, %c0_4] : memref<1x64x128xbf16, #tpu.memory_space<vmem>>, vector<1x64x128xbf16>
    %3 = vector.shape_cast %2 : vector<1x64x128xbf16> to vector<64x128xbf16>
    %4 = tpu.concatenate %1, %3 in 0 : vector<128x128xbf16>, vector<64x128xbf16> -> vector<192x128xbf16>
    %5 = vector.extract_strided_slice %4 {offsets = [0, 0], sizes = [128, 128], strides = [1, 1]} : vector<192x128xbf16> to vector<128x128xbf16>
    %6 = vector.extract_strided_slice %4 {offsets = [1, 0], sizes = [128, 128], strides = [1, 1]} : vector<192x128xbf16> to vector<128x128xbf16>
    %7 = vector.extract_strided_slice %4 {offsets = [2, 0], sizes = [128, 128], strides = [1, 1]} : vector<192x128xbf16> to vector<128x128xbf16>
    %8 = vector.extract_strided_slice %4 {offsets = [26, 0], sizes = [128, 128], strides = [1, 1]} : vector<192x128xbf16> to vector<128x128xbf16>
    %9 = vector.extract_strided_slice %4 {offsets = [27, 0], sizes = [128, 128], strides = [1, 1]} : vector<192x128xbf16> to vector<128x128xbf16>
    %10 = vector.extract_strided_slice %4 {offsets = [28, 0], sizes = [128, 128], strides = [1, 1]} : vector<192x128xbf16> to vector<128x128xbf16>
    %11 = vector.extract_strided_slice %4 {offsets = [52, 0], sizes = [128, 128], strides = [1, 1]} : vector<192x128xbf16> to vector<128x128xbf16>
    %12 = vector.extract_strided_slice %4 {offsets = [53, 0], sizes = [128, 128], strides = [1, 1]} : vector<192x128xbf16> to vector<128x128xbf16>
    %13 = vector.extract_strided_slice %4 {offsets = [54, 0], sizes = [128, 128], strides = [1, 1]} : vector<192x128xbf16> to vector<128x128xbf16>
    %14 = tpu.concatenate %5, %6, %7, %8, %9, %10, %11, %12, %13 in 1 : vector<128x128xbf16>, vector<128x128xbf16>, vector<128x128xbf16>, vector<128x128xbf16>, vector<128x128xbf16>, vector<128x128xbf16>, vector<128x128xbf16>, vector<128x128xbf16>, vector<128x128xbf16> -> vector<128x1152xbf16>
    %c0_5 = arith.constant 0 : index
    %c0_6 = arith.constant 0 : index
    %15 = vector.load %arg4[%c0_5, %c0_6] : memref<1152x128xbf16, #tpu.memory_space<vmem>>, vector<1152x128xbf16>
    %cst = arith.constant dense<0.000000e+00> : vector<128x128xf32>
    %16 = tpu.matmul %14, %15, %cst {dimension_numbers = #tpu.dot_dimension_numbers<[1], [0], [0], [1], [0, 0, 1, 1], [], []>} : vector<128x1152xbf16>, vector<1152x128xbf16>, vector<128x128xf32> -> vector<128x128xf32>
    %c0_7 = arith.constant 0 : index
    %c0_8 = arith.constant 0 : index
    %17 = vector.load %arg5[%c0_7, %c0_8] : memref<1x128xf32, #tpu.memory_space<vmem>>, vector<1x128xf32>
    %18 = vector.broadcast %17 : vector<1x128xf32> to vector<128x128xf32>
    %19 = arith.addf %16, %18 : vector<128x128xf32>
    %20 = arith.truncf %19 : vector<128x128xf32> to vector<128x128xbf16>
    %c0_9 = arith.constant 0 : index
    %c0_10 = arith.constant 0 : index
    %c0_11 = arith.constant 0 : index
    %21 = vector.load %arg6[%c0_9, %c0_10, %c0_11] : memref<1x128x128xbf16, #tpu.memory_space<vmem>>, vector<1x128x128xbf16>
    %22 = vector.shape_cast %21 : vector<1x128x128xbf16> to vector<128x128xbf16>
    %23 = vector.shape_cast %20 : vector<128x128xbf16> to vector<1x128x128xbf16>
    tpu.vector_store %arg6[%c0_9, %c0_10, %c0_11], %23 {strides = array<i32>} : memref<1x128x128xbf16, #tpu.memory_space<vmem>>, vector<1x128x128xbf16>,
    return
  }
  func.func @transform_0(%arg0: i32, %arg1: i32) -> (i32, i32, i32) {
    %c0_i32 = arith.constant 0 : i32
    %c0_i32_0 = arith.constant 0 : i32
    return %arg0, %arg1, %c0_i32 : i32, i32, i32
  }
  func.func @transform_1(%arg0: i32, %arg1: i32) -> (i32, i32, i32) {
    %c1_i32 = arith.constant 1 : i32
    %0 = arith.addi %arg1, %c1_i32 : i32
    %c2_i32 = arith.constant 2 : i32
    %1 = arith.muli %0, %c2_i32 : i32
    %c0_i32 = arith.constant 0 : i32
    %c0_i32_0 = arith.constant 0 : i32
    return %arg0, %1, %c0_i32 : i32, i32, i32
  }
  func.func @transform_2(%arg0: i32, %arg1: i32) -> (i32, i32) {
    %c0_i32 = arith.constant 0 : i32
    %c0_i32_0 = arith.constant 0 : i32
    %c0_i32_1 = arith.constant 0 : i32
    return %c0_i32, %c0_i32_0 : i32, i32
  }
  func.func @transform_3(%arg0: i32, %arg1: i32) -> (i32, i32) {
    %c0_i32 = arith.constant 0 : i32
    %c0_i32_0 = arith.constant 0 : i32
    %c0_i32_1 = arith.constant 0 : i32
    return %c0_i32, %c0_i32_0 : i32, i32
  }
  func.func @transform_4(%arg0: i32, %arg1: i32) -> (i32, i32, i32) {
    %c0_i32 = arith.constant 0 : i32
    %c0_i32_0 = arith.constant 0 : i32
    return %arg0, %arg1, %c0_i32 : i32, i32, i32
  }
}

</mosaic_0001>

<llo_original>
// kernel: tpu_custom_call.1
$region0: #{tpu_custom_call.1}
  #allocation0 [shape = 'u32[]', space=smem, size = 0x4, offset = 0x4, fixed_abs, tag = 'smem constant byte address 0x4 - core index']
  #allocation1 [shape = 'u32[72,128]{1,0:T(1,128)}', space=vmem, size = 0x9000, scoped, tag = 'internal scratch']
  %s0 = inlined_call_operand.hbm [shape: bf16[2,704,128], index: 0, kind: input, shape index: {}]
  %s1 = inlined_call_operand.hbm [shape: bf16[2,704,128], index: 1, kind: input, shape index: {}]
  %s2 = inlined_call_operand.hbm [shape: bf16[1152,128], index: 2, kind: input, shape index: {}]
  %s3 = inlined_call_operand.vmem [shape: f32[1,128], index: 3, kind: input, shape index: {}]
  %s4 = inlined_call_operand.hbm [shape: bf16[2,640,128], index: 4, kind: output, shape index: {}]
  %s5 = sld [smem:[#allocation0]]
  $region61: #{tpu_custom_call.1} parent=0
    _
  %s7 = ssub.s32 1, %s5
  %s8 = scalar_select 0, %s7, %s5
  $region1: #{tpu_custom_call.1} parent=0
    #allocation2 [shape = 'u8[65536]{0}', space=vmem, size = 0x10000, scoped, tag = 'input window, operand 0']
    #allocation3 [shape = 's32[2]{0}', space=sflag, size = 0x8, scoped, tag = 'scoped memory for tpu_custom_call.1']
    #allocation4 [shape = 's32[2]{0}', space=sflag, size = 0x8, scoped, tag = 'scoped memory for tpu_custom_call.1']
    #allocation5 [shape = 'u8[32768]{0}', space=vmem, size = 0x8000, scoped, tag = 'input window, operand 1']
    #allocation6 [shape = 's32[2]{0}', space=sflag, size = 0x8, scoped, tag = 'scoped memory for tpu_custom_call.1']
    #allocation7 [shape = 'u8[294912]{0}', space=vmem, size = 0x48000, scoped, tag = 'input window, operand 2, single buffered']
    #allocation8 [shape = 'u8[65536]{0}', space=vmem, size = 0x10000, scoped, tag = 'output window, operand 0']
    %9 = vsyncpa [#allocation3], 0
    %s10 = scalar_lea.sflag [#allocation3], 1
    %11 = vsyncpa %s10, 0
    %12 = vsyncpa [#allocation6], 0
    %s13 = scalar_lea.sflag [#allocation6], 1
    %14 = vsyncpa %s13, 0
    %15 = vsyncpa [#allocation4], 0
    %s16 = scalar_lea.sflag [#allocation4], 1
    %17 = vsyncpa %s16, 0
    loop: start=0, step=1, limit=12
    $region2: #{tpu_custom_call.1} parent=1 // loop_pre_header
      _
    $region3: #{tpu_custom_call.1} parent=1 // loop_header
      %s19 = sphi 0, %s23
      %p20 = scmp.ge.s32.totalorder %s19, 12
      %s26 = sphi 0, %s38
      %s27 = sphi 0, %s34
      %s28 = sphi 0, %s26
      %s29 = sphi 0, %s27
      %s30 = sphi 0, %s28
      %s31 = sphi 0, %s29
      %s43 = sphi 0, %s45
      %s46 = sphi 0, %s43
      %s47 = sphi 0, %s46
      %s63 = sphi 0, %s47
      %s75 = sphi 0, %s77
      %s78 = sphi 0, %s75
      %s79 = sphi 0, %s78
      %s95 = sphi 0, %s79
      %s99 = sphi 0, %s99
      %s101 = sphi 0, %s99
      %s102 = sphi 0, %s101
      %s116 = sphi 0, %s102
      %s120 = sphi 0, %s120
      %s122 = sphi 0, %s120
      %s123 = sphi 0, %s122
      %s137 = sphi 0, %s123
      %s145 = sphi 0, %s147
      %s148 = sphi 0, %s145
      %s149 = sphi 0, %s148
      %s165 = sphi 0, %s149
    $region4: #{tpu_custom_call.1} parent=1 // loop_header_branch
      %22 = sbr.rel (%p20) target = $region8
    $region5: #{tpu_custom_call.1} parent=1 // loop_body
      %s24 = ssub.s32 %s19, 1
      %s25 = ssub.s32 %s19, 2
      %s32 = sadd.s32 1, %s27
      %p33 = scmp.ge.s32.totalorder %s32, 5
      %s34 = scalar_select %p33, 0, %s32
      %s35 = sadd.s32 1, %s26
      %s36 = scalar_select %p33, %s35, %s26
      %p37 = scmp.ge.s32.totalorder %s36, 2
      %s38 = scalar_select %p37, 0, %s36
      %s39 = ssub.s32 %s26, %s38
      %s40 = ssub.s32 %s27, %s34
      %s41 = sor.u32 %s39, %s40
      %p42 = scmp.eq.s32.totalorder %s41, 0
      %s44 = sadd.s32 %s43, 1
      %s45 = scalar_select %p42, %s43, %s44
      %p48 = pneg %p42
      %p49 = scmp.eq.s32.totalorder %s19, 9
      %p50 = por %p48, %p49
      %p51 = scmp.ne.s32.totalorder %s43, %s46
      %p52 = scmp.eq.s32.totalorder %s19, 0
      %p53 = por %p51, %p52
      %p54 = scmp.ne.s32.totalorder %s43, %s46
      %p55 = scmp.eq.s32.totalorder %s24, 9
      %p56 = por %p54, %p55
      %p57 = scmp.ne.s32.totalorder %s46, %s47
      %p58 = scmp.eq.s32.totalorder %s24, 0
      %p59 = por %p57, %p58
      %p60 = scmp.ne.s32.totalorder %s46, %s47
      %p61 = scmp.eq.s32.totalorder %s25, 9
      %p62 = por %p60, %p61
      %p64 = scmp.ne.s32.totalorder %s47, %s63
      %p65 = scmp.eq.s32.totalorder %s25, 0
      %p66 = por %p64, %p65
      %s67 = sadd.s32 %s27, 1
      %s68 = smul.u32 %s67, 2
      %s69 = sadd.s32 %s34, 1
      %s70 = smul.u32 %s69, 2
      %s71 = ssub.s32 %s26, %s38
      %s72 = ssub.s32 %s68, %s70
      %s73 = sor.u32 %s71, %s72
      %p74 = scmp.eq.s32.totalorder %s73, 0
      %s76 = sadd.s32 %s75, 1
      %s77 = scalar_select %p74, %s75, %s76
      %p80 = pneg %p74
      %p81 = scmp.eq.s32.totalorder %s19, 9
      %p82 = por %p80, %p81
      %p83 = scmp.ne.s32.totalorder %s75, %s78
      %p84 = scmp.eq.s32.totalorder %s19, 0
      %p85 = por %p83, %p84
      %p86 = scmp.ne.s32.totalorder %s75, %s78
      %p87 = scmp.eq.s32.totalorder %s24, 9
      %p88 = por %p86, %p87
      %p89 = scmp.ne.s32.totalorder %s78, %s79
      %p90 = scmp.eq.s32.totalorder %s24, 0
      %p91 = por %p89, %p90
      %p92 = scmp.ne.s32.totalorder %s78, %s79
      %p93 = scmp.eq.s32.totalorder %s25, 9
      %p94 = por %p92, %p93
      %p96 = scmp.ne.s32.totalorder %s79, %s95
      %p97 = scmp.eq.s32.totalorder %s25, 0
      %p98 = por %p96, %p97
      %s100 = sadd.s32 %s99, 1
      %p103 = scmp.eq.s32.totalorder %s19, 9
      %p104 = scmp.ne.s32.totalorder %s99, %s101
      %p105 = scmp.eq.s32.totalorder %s19, 0
      %p106 = por %p104, %p105
      %p107 = scmp.ne.s32.totalorder %s99, %s101
      %p108 = scmp.eq.s32.totalorder %s24, 9
      %p109 = por %p107, %p108
      %p110 = scmp.ne.s32.totalorder %s101, %s102
      %p111 = scmp.eq.s32.totalorder %s24, 0
      %p112 = por %p110, %p111
      %p113 = scmp.ne.s32.totalorder %s101, %s102
      %p114 = scmp.eq.s32.totalorder %s25, 9
      %p115 = por %p113, %p114
      %p117 = scmp.ne.s32.totalorder %s102, %s116
      %p118 = scmp.eq.s32.totalorder %s25, 0
      %p119 = por %p117, %p118
      %s121 = sadd.s32 %s120, 1
      %p124 = scmp.eq.s32.totalorder %s19, 9
      %p125 = scmp.ne.s32.totalorder %s120, %s122
      %p126 = scmp.eq.s32.totalorder %s19, 0
      %p127 = por %p125, %p126
      %p128 = scmp.ne.s32.totalorder %s120, %s122
      %p129 = scmp.eq.s32.totalorder %s24, 9
      %p130 = por %p128, %p129
      %p131 = scmp.ne.s32.totalorder %s122, %s123
      %p132 = scmp.eq.s32.totalorder %s24, 0
      %p133 = por %p131, %p132
      %p134 = scmp.ne.s32.totalorder %s122, %s123
      %p135 = scmp.eq.s32.totalorder %s25, 9
      %p136 = por %p134, %p135
      %p138 = scmp.ne.s32.totalorder %s123, %s137
      %p139 = scmp.eq.s32.totalorder %s25, 0
      %p140 = por %p138, %p139
      %s141 = ssub.s32 %s26, %s38
      %s142 = ssub.s32 %s27, %s34
      %s143 = sor.u32 %s141, %s142
      %p144 = scmp.eq.s32.totalorder %s143, 0
      %s146 = sadd.s32 %s145, 1
      %s147 = scalar_select %p144, %s145, %s146
      %p150 = pneg %p144
      %p151 = scmp.eq.s32.totalorder %s19, 9
      %p152 = por %p150, %p151
      %p153 = scmp.ne.s32.totalorder %s145, %s148
      %p154 = scmp.eq.s32.totalorder %s19, 0
      %p155 = por %p153, %p154
      %p156 = scmp.ne.s32.totalorder %s145, %s148
      %p157 = scmp.eq.s32.totalorder %s24, 9
      %p158 = por %p156, %p157
      %p159 = scmp.ne.s32.totalorder %s148, %s149
      %p160 = scmp.eq.s32.totalorder %s24, 0
      %p161 = por %p159, %p160
      %p162 = scmp.ne.s32.totalorder %s148, %s149
      %p163 = scmp.eq.s32.totalorder %s25, 9
      %p164 = por %p162, %p163
      %p166 = scmp.ne.s32.totalorder %s149, %s165
      %p167 = scmp.eq.s32.totalorder %s25, 0
      %p168 = por %p166, %p167
      %p169 = scmp.le.s32.totalorder 1, %s19
      %p170 = scmp.lt.s32.totalorder %s19, 11
      %p171 = pnand %p169, %p170
      %p172 = pneg %p171
      // Predicated region
      $region9: #{tpu_custom_call.1} parent=5 // pred_check
        _
      $region10: #{tpu_custom_call.1} parent=5 // pred_check_branch
        %174 = sbr.rel (%p171) target = $region12
      $region11: #{tpu_custom_call.1} parent=5 // pred_region
        %s175 = ssub.s32 %s19, 1
        // Predicated region
        $region13: #{tpu_custom_call.1} parent=11 // pred_check
          %p176 = pneg %p112
        $region14: #{tpu_custom_call.1} parent=11 // pred_check_branch
          %178 = sbr.rel (%p176) target = $region16
        $region15: #{tpu_custom_call.1} parent=11 // pred_region
          %180 = vsyncadd [#allocation6], 0
          %s181 = sshll.u32 %s2, 4
          %s182 = int_to_ptr.hbm [resolvable:$true] %s181
          %s183 = sshll.u32 [#allocation7], 4
          %s184 = int_to_ptr.vmem [resolvable:$true] %s183
          %189 = dma.hbm_to_vmem [thread:$0]  %s182, 9216, %s184, [#allocation6], 64, 64, 4
        $region16: #{tpu_custom_call.1} parent=11 // pred_fallthru
          _
        // Predicated region
        $region17: #{tpu_custom_call.1} parent=11 // pred_check
          %p190 = pneg %p133
        $region18: #{tpu_custom_call.1} parent=11 // pred_check_branch
          %192 = sbr.rel (%p190) target = $region20
        $region19: #{tpu_custom_call.1} parent=11 // pred_region
          _
        $region20: #{tpu_custom_call.1} parent=11 // pred_fallthru
          _
      $region12: #{tpu_custom_call.1} parent=5 // pred_fallthru
        _
      %p193 = scmp.lt.s32.totalorder %s19, 10
      // Predicated region
      $region21: #{tpu_custom_call.1} parent=5 // pred_check
        %p194 = pneg %p193
      $region22: #{tpu_custom_call.1} parent=5 // pred_check_branch
        %196 = sbr.rel (%p194) target = $region24
      $region23: #{tpu_custom_call.1} parent=5 // pred_region
        // Predicated region
        $region25: #{tpu_custom_call.1} parent=23 // pred_check
          %p197 = pneg %p53
        $region26: #{tpu_custom_call.1} parent=23 // pred_check_branch
          %199 = sbr.rel (%p197) target = $region28
        $region27: #{tpu_custom_call.1} parent=23 // pred_region
          %s200 = sand.u32 %s43, 1
          %s201 = scalar_lea.sflag [#allocation3], %s200
          %s202 = sand.u32 %s43, 1
          %s203 = smul.addr %s202, 64
          %s204 = scalar_lea.vmem [#allocation2], %s203
          %s205 = smul.u32 16, %s27
          %s206 = ssub.s32 88, %s205
          %p207 = scmp.lt.s32.totalorder %s206, 16
          %s208 = scalar_select %p207, %s206, 16
          %s209 = smul.u32 4, %s208
          %s210 = ssub.s32 64, %s209
          %s211 = sshll.u32 %s210, 4
          %212 = vsyncadd %s201, %s211
          %p213 = scmp.ne.s32.totalorder 0, %s209
          %s214 = smul.addr %s26, 88
          %s215 = sadd.s32 %s205, %s214
          %s216 = smul.addr %s215, 4
          %s217 = scalar_lea.hbm %s0, %s216
          %s218 = smul.u32 4, %s208
          %s219 = sshll.u32 %s217, 4
          %s220 = int_to_ptr.hbm [resolvable:$true] %s219
          %s221 = sshll.u32 %s204, 4
          %s222 = int_to_ptr.vmem [resolvable:$true] %s221
          %s223 = sshll.u32 %s218, 4
          %227 = dma.hbm_to_vmem [thread:$0]  (%p213), %s220, %s223, %s222, %s201, 64, 64, 4
        $region28: #{tpu_custom_call.1} parent=23 // pred_fallthru
          _
        // Predicated region
        $region29: #{tpu_custom_call.1} parent=23 // pred_check
          %p228 = pneg %p85
        $region30: #{tpu_custom_call.1} parent=23 // pred_check_branch
          %230 = sbr.rel (%p228) target = $region32
        $region31: #{tpu_custom_call.1} parent=23 // pred_region
          %s231 = sand.u32 %s19, 1
          %s232 = scalar_lea.sflag [#allocation6], %s231
          %s233 = sand.u32 %s75, 1
          %s234 = smul.addr %s233, 32
          %s235 = scalar_lea.vmem [#allocation5], %s234
          %s236 = sadd.s32 %s27, 1
          %s237 = smul.u32 %s236, 2
          %s238 = smul.u32 8, %s237
          %240 = vsyncadd %s232, 0
          %s241 = smul.addr %s26, 88
          %s242 = sadd.s32 %s238, %s241
          %s243 = smul.addr %s242, 4
          %s244 = scalar_lea.hbm %s1, %s243
          %s245 = sshll.u32 %s244, 4
          %s246 = int_to_ptr.hbm [resolvable:$true] %s245
          %s247 = sshll.u32 %s235, 4
          %s248 = int_to_ptr.vmem [resolvable:$true] %s247
          %253 = dma.hbm_to_vmem [thread:$0]  %s246, 512, %s248, %s232, 64, 64, 4
        $region32: #{tpu_custom_call.1} parent=23 // pred_fallthru
          _
      $region24: #{tpu_custom_call.1} parent=5 // pred_fallthru
        _
      %p254 = scmp.le.s32.totalorder 1, %s19
      %p255 = scmp.lt.s32.totalorder %s19, 11
      %p256 = pnand %p254, %p255
      %p257 = pneg %p256
      // Predicated region
      $region33: #{tpu_custom_call.1} parent=5 // pred_check
        _
      $region34: #{tpu_custom_call.1} parent=5 // pred_check_branch
        %259 = sbr.rel (%p256) target = $region36
      $region35: #{tpu_custom_call.1} parent=5 // pred_region
        %s260 = ssub.s32 %s19, 1
        %s261 = sand.u32 %s46, 1
        %s262 = scalar_lea.sflag [#allocation3], %s261
        %s263 = sand.u32 %s46, 1
        %s264 = smul.addr %s263, 64
        %s265 = scalar_lea.vmem [#allocation2], %s264
        // Predicated region
        $region37: #{tpu_custom_call.1} parent=35 // pred_check
          %p266 = pneg %p59
        $region38: #{tpu_custom_call.1} parent=35 // pred_check_branch
          %268 = sbr.rel (%p266) target = $region40
        $region39: #{tpu_custom_call.1} parent=35 // pred_region
          %270 = dma.done %s262, 1024
        $region40: #{tpu_custom_call.1} parent=35 // pred_fallthru
          _
        %s271 = sand.u32 %s24, 1
        %s272 = scalar_lea.sflag [#allocation6], %s271
        %s273 = sand.u32 %s78, 1
        %s274 = smul.addr %s273, 32
        %s275 = scalar_lea.vmem [#allocation5], %s274
        // Predicated region
        $region41: #{tpu_custom_call.1} parent=35 // pred_check
          %p276 = pneg %p91
        $region42: #{tpu_custom_call.1} parent=35 // pred_check_branch
          %278 = sbr.rel (%p276) target = $region44
        $region43: #{tpu_custom_call.1} parent=35 // pred_region
          %280 = dma.done %s272, 512
        $region44: #{tpu_custom_call.1} parent=35 // pred_fallthru
          _
        // Predicated region
        $region45: #{tpu_custom_call.1} parent=35 // pred_check
          %p281 = pneg %p112
        $region46: #{tpu_custom_call.1} parent=35 // pred_check_branch
          %283 = sbr.rel (%p281) target = $region48
        $region47: #{tpu_custom_call.1} parent=35 // pred_region
          %285 = dma.done [#allocation6], 9216
        $region48: #{tpu_custom_call.1} parent=35 // pred_fallthru
          _
        %s286 = sand.u32 %s46, 1
        %s287 = scalar_lea.sflag [#allocation3], %s286
        %s288 = sand.u32 %s46, 1
        %s289 = smul.addr %s288, 64
        %s290 = scalar_lea.vmem [#allocation2], %s289
        %p291 = pneg %p59
        %p292 = pneg %p56
        %s293 = sand.u32 %s24, 1
        %s294 = scalar_lea.sflag [#allocation6], %s293
        %s295 = sand.u32 %s78, 1
        %s296 = smul.addr %s295, 32
        %s297 = scalar_lea.vmem [#allocation5], %s296
        %p298 = pneg %p91
        %p299 = pneg %p88
        %p300 = pneg %p112
        %p301 = pneg %p109
        %p302 = pneg %p133
        %p303 = pneg %p130
        %p304 = pneg %p161
        %p305 = pneg %p158
        %s306 = sand.u32 %s148, 1
        %s307 = scalar_lea.sflag [#allocation4], %s306
        %s308 = sand.u32 %s148, 1
        %s309 = smul.addr %s308, 64
        %s310 = scalar_lea.vmem [#allocation8], %s309
        %s311 = smul.u32 16, %s29
        %s312 = ssub.s32 88, %s311
        %p313 = scmp.lt.s32.totalorder %s312, 16
        %s314 = scalar_select %p313, %s312, 16
        %s315 = smul.u32 4, %s314
        %s316 = sadd.s32 %s29, 1
        %s317 = smul.u32 %s316, 2
        %s318 = smul.u32 8, %s317
        %s319 = smul.u32 16, %s29
        %v320 = vld [vmem:[%s265] sm:$0xf]
        %v321 = vld [vmem:[%s265 + $0x4] sm:$0xf]
        %v322 = vld [vmem:[%s265 + $0x8] sm:$0xf]
        %v323 = vld [vmem:[%s265 + $0xc] sm:$0xf]
        %v324 = vld [vmem:[%s265 + $0x10] sm:$0xf]
        %v325 = vld [vmem:[%s265 + $0x14] sm:$0xf]
        %v326 = vld [vmem:[%s265 + $0x18] sm:$0xf]
        %v327 = vld [vmem:[%s265 + $0x1c] sm:$0xf]
        %v328 = vld [vmem:[%s265 + $0x20] sm:$0xf]
        %v329 = vld [vmem:[%s265 + $0x24] sm:$0xf]
        %v330 = vld [vmem:[%s265 + $0x28] sm:$0xf]
        %v331 = vld [vmem:[%s265 + $0x2c] sm:$0xf]
        %v332 = vld [vmem:[%s265 + $0x30] sm:$0xf]
        %v333 = vld [vmem:[%s265 + $0x34] sm:$0xf]
        %v334 = vld [vmem:[%s265 + $0x38] sm:$0xf]
        %v335 = vld [vmem:[%s265 + $0x3c] sm:$0xf]
        %v336 = vld [vmem:[%s275] sm:$0xf]
        %v337 = vld [vmem:[%s275 + $0x4] sm:$0xf]
        %v338 = vld [vmem:[%s275 + $0x8] sm:$0xf]
        %v339 = vld [vmem:[%s275 + $0xc] sm:$0xf]
        %v340 = vld [vmem:[%s275 + $0x10] sm:$0xf]
        %v341 = vld [vmem:[%s275 + $0x14] sm:$0xf]
        %v342 = vld [vmem:[%s275 + $0x18] sm:$0xf]
        %v343 = vld [vmem:[%s275 + $0x1c] sm:$0xf]
        %v360 = vunpack.c.l.b16 %v320
        %v361 = vunpack.c.l.b16 %v321
        %v362 = vunpack.c.l.b16 %v322
        %v363 = vunpack.c.l.b16 %v323
        %v364 = vunpack.c.l.b16 %v324
        %v365 = vunpack.c.l.b16 %v325
        %v366 = vunpack.c.l.b16 %v326
        %v367 = vunpack.c.l.b16 %v327
        %v368 = vunpack.c.l.b16 %v328
        %v369 = vunpack.c.l.b16 %v329
        %v370 = vunpack.c.l.b16 %v330
        %v371 = vunpack.c.l.b16 %v331
        %v372 = vunpack.c.l.b16 %v332
        %v373 = vunpack.c.l.b16 %v333
        %v374 = vunpack.c.l.b16 %v334
        %v375 = vunpack.c.l.b16 %v335
        %v376 = vpack.c.b16 %v361, %v360
        %v377 = vpack.c.b16 %v363, %v362
        %v378 = vpack.c.b16 %v365, %v364
        %v379 = vpack.c.b16 %v367, %v366
        %v380 = vpack.c.b16 %v369, %v368
        %v381 = vpack.c.b16 %v371, %v370
        %v382 = vpack.c.b16 %v373, %v372
        %v383 = vpack.c.b16 %v375, %v374
        %v400 = vunpack.c.l.b16 %v336
        %v401 = vunpack.c.l.b16 %v337
        %v402 = vunpack.c.l.b16 %v338
        %v403 = vunpack.c.l.b16 %v339
        %v404 = vunpack.c.l.b16 %v340
        %v405 = vunpack.c.l.b16 %v341
        %v406 = vunpack.c.l.b16 %v342
        %v407 = vunpack.c.l.b16 %v343
        %v408 = vpack.c.b16 %v401, %v400
        %v409 = vpack.c.b16 %v403, %v402
        %v410 = vpack.c.b16 %v405, %v404
        %v411 = vpack.c.b16 %v407, %v406
        %vm412 = vsmask.f32 7424
        %v414 = vshrl.u32 %v376, 16
        %v416 = vshll.u32 %v376, 16
        %v418 = vrot.slane %v416, 1
        %v419 = vor.u32 %v414, %v418
        %v421 = vshll.u32 %v377, 16
        %v423 = vrot.slane %v421, 1
        %v424 = vsel %vm412, %v419, %v423
        %v425 = vshrl.u32 %v377, 16
        %v427 = vor.u32 %v425, %v423
        %v429 = vshll.u32 %v378, 16
        %v431 = vrot.slane %v429, 1
        %v432 = vsel %vm412, %v427, %v431
        %v433 = vshrl.u32 %v378, 16
        %v435 = vor.u32 %v433, %v431
        %v437 = vshll.u32 %v379, 16
        %v439 = vrot.slane %v437, 1
        %v440 = vsel %vm412, %v435, %v439
        %v441 = vshrl.u32 %v379, 16
        %v443 = vor.u32 %v441, %v439
        %v445 = vshll.u32 %v380, 16
        %v447 = vrot.slane %v445, 1
        %v448 = vsel %vm412, %v443, %v447
        %v449 = vshrl.u32 %v380, 16
        %v451 = vor.u32 %v449, %v447
        %v453 = vshll.u32 %v381, 16
        %v455 = vrot.slane %v453, 1
        %v456 = vsel %vm412, %v451, %v455
        %v457 = vshrl.u32 %v381, 16
        %v459 = vor.u32 %v457, %v455
        %v461 = vshll.u32 %v382, 16
        %v463 = vrot.slane %v461, 1
        %v464 = vsel %vm412, %v459, %v463
        %v465 = vshrl.u32 %v382, 16
        %v467 = vor.u32 %v465, %v463
        %v469 = vshll.u32 %v383, 16
        %v471 = vrot.slane %v469, 1
        %v472 = vsel %vm412, %v467, %v471
        %v473 = vshrl.u32 %v383, 16
        %v475 = vor.u32 %v473, %v471
        %v477 = vshll.u32 %v408, 16
        %v479 = vrot.slane %v477, 1
        %v480 = vsel %vm412, %v475, %v479
        %vm489 = vcmask 1046528
        %v490 = vrot.slane %v376, 1
        %v491 = vrot.slane %v377, 1
        %v492 = vsel %vm489, %v490, %v491
        %v493 = vrot.slane %v378, 1
        %v494 = vsel %vm489, %v491, %v493
        %v495 = vrot.slane %v379, 1
        %v496 = vsel %vm489, %v493, %v495
        %v497 = vrot.slane %v380, 1
        %v498 = vsel %vm489, %v495, %v497
        %v499 = vrot.slane %v381, 1
        %v500 = vsel %vm489, %v497, %v499
        %v501 = vrot.slane %v382, 1
        %v502 = vsel %vm489, %v499, %v501
        %v503 = vrot.slane %v383, 1
        %v504 = vsel %vm489, %v501, %v503
        %v505 = vrot.slane %v408, 1
        %v506 = vsel %vm489, %v503, %v505
        %vm515 = vcmask 1042432
        %v516 = vrot.slane %v377, 5
        %v517 = vrot.slane %v378, 5
        %v518 = vsel %vm515, %v516, %v517
        %v519 = vrot.slane %v379, 5
        %v520 = vsel %vm515, %v517, %v519
        %v521 = vrot.slane %v380, 5
        %v522 = vsel %vm515, %v519, %v521
        %v523 = vrot.slane %v381, 5
        %v524 = vsel %vm515, %v521, %v523
        %v525 = vrot.slane %v382, 5
        %v526 = vsel %vm515, %v523, %v525
        %v527 = vrot.slane %v383, 5
        %v528 = vsel %vm515, %v525, %v527
        %v529 = vrot.slane %v408, 5
        %v530 = vsel %vm515, %v527, %v529
        %v531 = vrot.slane %v409, 5
        %v532 = vsel %vm515, %v529, %v531
        %vm541 = vsmask.f32 2304
        %v542 = vrot.slane %v425, 5
        %v543 = vrot.slane %v421, 6
        %v544 = vor.u32 %v542, %v543
        %v545 = vrot.slane %v433, 5
        %v546 = vrot.slane %v429, 6
        %v547 = vor.u32 %v545, %v546
        %v548 = vsel %vm541, %v544, %v547
        %v549 = vrot.slane %v441, 5
        %v550 = vrot.slane %v437, 6
        %v551 = vor.u32 %v549, %v550
        %v552 = vsel %vm541, %v547, %v551
        %v553 = vrot.slane %v449, 5
        %v554 = vrot.slane %v445, 6
        %v555 = vor.u32 %v553, %v554
        %v556 = vsel %vm541, %v551, %v555
        %v557 = vrot.slane %v457, 5
        %v558 = vrot.slane %v453, 6
        %v559 = vor.u32 %v557, %v558
        %v560 = vsel %vm541, %v555, %v559
        %v561 = vrot.slane %v465, 5
        %v562 = vrot.slane %v461, 6
        %v563 = vor.u32 %v561, %v562
        %v564 = vsel %vm541, %v559, %v563
        %v565 = vrot.slane %v473, 5
        %v566 = vrot.slane %v469, 6
        %v567 = vor.u32 %v565, %v566
        %v568 = vsel %vm541, %v563, %v567
        %v569 = vshrl.u32 %v408, 16
        %v571 = vrot.slane %v569, 5
        %v572 = vrot.slane %v477, 6
        %v573 = vor.u32 %v571, %v572
        %v574 = vsel %vm541, %v567, %v573
        %v576 = vshrl.u32 %v409, 16
        %v578 = vrot.slane %v576, 5
        %v579 = vshll.u32 %v409, 16
        %v581 = vrot.slane %v579, 6
        %v582 = vor.u32 %v578, %v581
        %v583 = vsel %vm541, %v573, %v582
        %vm592 = vcmask 1041408
        %v593 = vrot.slane %v377, 6
        %v594 = vrot.slane %v378, 6
        %v595 = vsel %vm592, %v593, %v594
        %v596 = vrot.slane %v379, 6
        %v597 = vsel %vm592, %v594, %v596
        %v598 = vrot.slane %v380, 6
        %v599 = vsel %vm592, %v596, %v598
        %v600 = vrot.slane %v381, 6
        %v601 = vsel %vm592, %v598, %v600
        %v602 = vrot.slane %v382, 6
        %v603 = vsel %vm592, %v600, %v602
        %v604 = vrot.slane %v383, 6
        %v605 = vsel %vm592, %v602, %v604
        %v606 = vrot.slane %v408, 6
        %v607 = vsel %vm592, %v604, %v606
        %v608 = vrot.slane %v409, 6
        %v609 = vsel %vm592, %v606, %v608
        %vm618 = vcmask 1045504
        %v619 = vrot.slane %v379, 2
        %v620 = vrot.slane %v380, 2
        %v621 = vsel %vm618, %v619, %v620
        %v622 = vrot.slane %v381, 2
        %v623 = vsel %vm618, %v620, %v622
        %v624 = vrot.slane %v382, 2
        %v625 = vsel %vm618, %v622, %v624
        %v626 = vrot.slane %v383, 2
        %v627 = vsel %vm618, %v624, %v626
        %v628 = vrot.slane %v408, 2
        %v629 = vsel %vm618, %v626, %v628
        %v630 = vrot.slane %v409, 2
        %v631 = vsel %vm618, %v628, %v630
        %v632 = vrot.slane %v410, 2
        %v633 = vsel %vm618, %v630, %v632
        %v634 = vrot.slane %v411, 2
        %v635 = vsel %vm618, %v632, %v634
        %vm644 = vsmask.f32 5376
        %v645 = vrot.slane %v441, 2
        %v646 = vrot.slane %v437, 3
        %v647 = vor.u32 %v645, %v646
        %v648 = vrot.slane %v449, 2
        %v649 = vrot.slane %v445, 3
        %v650 = vor.u32 %v648, %v649
        %v651 = vsel %vm644, %v647, %v650
        %v652 = vrot.slane %v457, 2
        %v653 = vrot.slane %v453, 3
        %v654 = vor.u32 %v652, %v653
        %v655 = vsel %vm644, %v650, %v654
        %v656 = vrot.slane %v465, 2
        %v657 = vrot.slane %v461, 3
        %v658 = vor.u32 %v656, %v657
        %v659 = vsel %vm644, %v654, %v658
        %v660 = vrot.slane %v473, 2
        %v661 = vrot.slane %v469, 3
        %v662 = vor.u32 %v660, %v661
        %v663 = vsel %vm644, %v658, %v662
        %v664 = vrot.slane %v569, 2
        %v665 = vrot.slane %v477, 3
        %v666 = vor.u32 %v664, %v665
        %v667 = vsel %vm644, %v662, %v666
        %v668 = vrot.slane %v576, 2
        %v669 = vrot.slane %v579, 3
        %v670 = vor.u32 %v668, %v669
        %v671 = vsel %vm644, %v666, %v670
        %v673 = vshrl.u32 %v410, 16
        %v675 = vrot.slane %v673, 2
        %v676 = vshll.u32 %v410, 16
        %v678 = vrot.slane %v676, 3
        %v679 = vor.u32 %v675, %v678
        %v680 = vsel %vm644, %v670, %v679
        %v682 = vshrl.u32 %v411, 16
        %v684 = vrot.slane %v682, 2
        %v685 = vshll.u32 %v411, 16
        %v687 = vrot.slane %v685, 3
        %v688 = vor.u32 %v684, %v687
        %v689 = vsel %vm644, %v679, %v688
        %vm698 = vcmask 1044480
        %v699 = vrot.slane %v379, 3
        %v700 = vrot.slane %v380, 3
        %v701 = vsel %vm698, %v699, %v700
        %v702 = vrot.slane %v381, 3
        %v703 = vsel %vm698, %v700, %v702
        %v704 = vrot.slane %v382, 3
        %v705 = vsel %vm698, %v702, %v704
        %v706 = vrot.slane %v383, 3
        %v707 = vsel %vm698, %v704, %v706
        %v708 = vrot.slane %v408, 3
        %v709 = vsel %vm698, %v706, %v708
        %v710 = vrot.slane %v409, 3
        %v711 = vsel %vm698, %v708, %v710
        %v712 = vrot.slane %v410, 3
        %v713 = vsel %vm698, %v710, %v712
        %v714 = vrot.slane %v411, 3
        %v715 = vsel %vm698, %v712, %v714
        %v724 = vld [vmem:[#allocation7] sm:$0xf]
        %v725 = vld [vmem:[#allocation7 + $0x4] sm:$0xf]
        %v726 = vld [vmem:[#allocation7 + $0x8] sm:$0xf]
        %v727 = vld [vmem:[#allocation7 + $0xc] sm:$0xf]
        %v728 = vld [vmem:[#allocation7 + $0x10] sm:$0xf]
        %v729 = vld [vmem:[#allocation7 + $0x14] sm:$0xf]
        %v730 = vld [vmem:[#allocation7 + $0x18] sm:$0xf]
        %v731 = vld [vmem:[#allocation7 + $0x1c] sm:$0xf]
        %v732 = vld [vmem:[#allocation7 + $0x20] sm:$0xf]
        %v733 = vld [vmem:[#allocation7 + $0x24] sm:$0xf]
        %v734 = vld [vmem:[#allocation7 + $0x28] sm:$0xf]
        %v735 = vld [vmem:[#allocation7 + $0x2c] sm:$0xf]
        %v736 = vld [vmem:[#allocation7 + $0x30] sm:$0xf]
        %v737 = vld [vmem:[#allocation7 + $0x34] sm:$0xf]
        %v738 = vld [vmem:[#allocation7 + $0x38] sm:$0xf]
        %v739 = vld [vmem:[#allocation7 + $0x3c] sm:$0xf]
        %v740 = vld [vmem:[#allocation7 + $0x40] sm:$0xf]
        %v741 = vld [vmem:[#allocation7 + $0x44] sm:$0xf]
        %v742 = vld [vmem:[#allocation7 + $0x48] sm:$0xf]
        %v743 = vld [vmem:[#allocation7 + $0x4c] sm:$0xf]
        %v744 = vld [vmem:[#allocation7 + $0x50] sm:$0xf]
        %v745 = vld [vmem:[#allocation7 + $0x54] sm:$0xf]
        %v746 = vld [vmem:[#allocation7 + $0x58] sm:$0xf]
        %v747 = vld [vmem:[#allocation7 + $0x5c] sm:$0xf]
        %v748 = vld [vmem:[#allocation7 + $0x60] sm:$0xf]
        %v749 = vld [vmem:[#allocation7 + $0x64] sm:$0xf]
        %v750 = vld [vmem:[#allocation7 + $0x68] sm:$0xf]
        %v751 = vld [vmem:[#allocation7 + $0x6c] sm:$0xf]
        %v752 = vld [vmem:[#allocation7 + $0x70] sm:$0xf]
        %v753 = vld [vmem:[#allocation7 + $0x74] sm:$0xf]
        %v754 = vld [vmem:[#allocation7 + $0x78] sm:$0xf]
        %v755 = vld [vmem:[#allocation7 + $0x7c] sm:$0xf]
        %v756 = vld [vmem:[#allocation7 + $0x80] sm:$0xf]
        %v757 = vld [vmem:[#allocation7 + $0x84] sm:$0xf]
        %v758 = vld [vmem:[#allocation7 + $0x88] sm:$0xf]
        %v759 = vld [vmem:[#allocation7 + $0x8c] sm:$0xf]
        %v760 = vld [vmem:[#allocation7 + $0x90] sm:$0xf]
        %v761 = vld [vmem:[#allocation7 + $0x94] sm:$0xf]
        %v762 = vld [vmem:[#allocation7 + $0x98] sm:$0xf]
        %v763 = vld [vmem:[#allocation7 + $0x9c] sm:$0xf]
        %v764 = vld [vmem:[#allocation7 + $0xa0] sm:$0xf]
        %v765 = vld [vmem:[#allocation7 + $0xa4] sm:$0xf]
        %v766 = vld [vmem:[#allocation7 + $0xa8] sm:$0xf]
        %v767 = vld [vmem:[#allocation7 + $0xac] sm:$0xf]
        %v768 = vld [vmem:[#allocation7 + $0xb0] sm:$0xf]
        %v769 = vld [vmem:[#allocation7 + $0xb4] sm:$0xf]
        %v770 = vld [vmem:[#allocation7 + $0xb8] sm:$0xf]
        %v771 = vld [vmem:[#allocation7 + $0xbc] sm:$0xf]
        %v772 = vld [vmem:[#allocation7 + $0xc0] sm:$0xf]
        %v773 = vld [vmem:[#allocation7 + $0xc4] sm:$0xf]
        %v774 = vld [vmem:[#allocation7 + $0xc8] sm:$0xf]
        %v775 = vld [vmem:[#allocation7 + $0xcc] sm:$0xf]
        %v776 = vld [vmem:[#allocation7 + $0xd0] sm:$0xf]
        %v777 = vld [vmem:[#allocation7 + $0xd4] sm:$0xf]
        %v778 = vld [vmem:[#allocation7 + $0xd8] sm:$0xf]
        %v779 = vld [vmem:[#allocation7 + $0xdc] sm:$0xf]
        %v780 = vld [vmem:[#allocation7 + $0xe0] sm:$0xf]
        %v781 = vld [vmem:[#allocation7 + $0xe4] sm:$0xf]
        %v782 = vld [vmem:[#allocation7 + $0xe8] sm:$0xf]
        %v783 = vld [vmem:[#allocation7 + $0xec] sm:$0xf]
        %v784 = vld [vmem:[#allocation7 + $0xf0] sm:$0xf]
        %v785 = vld [vmem:[#allocation7 + $0xf4] sm:$0xf]
        %v786 = vld [vmem:[#allocation7 + $0xf8] sm:$0xf]
        %v787 = vld [vmem:[#allocation7 + $0xfc] sm:$0xf]
        %v788 = vld [vmem:[#allocation7 + $0x100] sm:$0xf]
        %v789 = vld [vmem:[#allocation7 + $0x104] sm:$0xf]
        %v790 = vld [vmem:[#allocation7 + $0x108] sm:$0xf]
        %v791 = vld [vmem:[#allocation7 + $0x10c] sm:$0xf]
        %v792 = vld [vmem:[#allocation7 + $0x110] sm:$0xf]
        %v793 = vld [vmem:[#allocation7 + $0x114] sm:$0xf]
        %v794 = vld [vmem:[#allocation7 + $0x118] sm:$0xf]
        %v795 = vld [vmem:[#allocation7 + $0x11c] sm:$0xf]
        %v796 = vld [vmem:[#allocation7 + $0x120] sm:$0xf]
        %v797 = vld [vmem:[#allocation7 + $0x124] sm:$0xf]
        %v798 = vld [vmem:[#allocation7 + $0x128] sm:$0xf]
        %v799 = vld [vmem:[#allocation7 + $0x12c] sm:$0xf]
        %v800 = vld [vmem:[#allocation7 + $0x130] sm:$0xf]
        %v801 = vld [vmem:[#allocation7 + $0x134] sm:$0xf]
        %v802 = vld [vmem:[#allocation7 + $0x138] sm:$0xf]
        %v803 = vld [vmem:[#allocation7 + $0x13c] sm:$0xf]
        %v804 = vld [vmem:[#allocation7 + $0x140] sm:$0xf]
        %v805 = vld [vmem:[#allocation7 + $0x144] sm:$0xf]
        %v806 = vld [vmem:[#allocation7 + $0x148] sm:$0xf]
        %v807 = vld [vmem:[#allocation7 + $0x14c] sm:$0xf]
        %v808 = vld [vmem:[#allocation7 + $0x150] sm:$0xf]
        %v809 = vld [vmem:[#allocation7 + $0x154] sm:$0xf]
        %v810 = vld [vmem:[#allocation7 + $0x158] sm:$0xf]
        %v811 = vld [vmem:[#allocation7 + $0x15c] sm:$0xf]
        %v812 = vld [vmem:[#allocation7 + $0x160] sm:$0xf]
        %v813 = vld [vmem:[#allocation7 + $0x164] sm:$0xf]
        %v814 = vld [vmem:[#allocation7 + $0x168] sm:$0xf]
        %v815 = vld [vmem:[#allocation7 + $0x16c] sm:$0xf]
        %v816 = vld [vmem:[#allocation7 + $0x170] sm:$0xf]
        %v817 = vld [vmem:[#allocation7 + $0x174] sm:$0xf]
        %v818 = vld [vmem:[#allocation7 + $0x178] sm:$0xf]
        %v819 = vld [vmem:[#allocation7 + $0x17c] sm:$0xf]
        %v820 = vld [vmem:[#allocation7 + $0x180] sm:$0xf]
        %v821 = vld [vmem:[#allocation7 + $0x184] sm:$0xf]
        %v822 = vld [vmem:[#allocation7 + $0x188] sm:$0xf]
        %v823 = vld [vmem:[#allocation7 + $0x18c] sm:$0xf]
        %v824 = vld [vmem:[#allocation7 + $0x190] sm:$0xf]
        %v825 = vld [vmem:[#allocation7 + $0x194] sm:$0xf]
        %v826 = vld [vmem:[#allocation7 + $0x198] sm:$0xf]
        %v827 = vld [vmem:[#allocation7 + $0x19c] sm:$0xf]
        %v828 = vld [vmem:[#allocation7 + $0x1a0] sm:$0xf]
        %v829 = vld [vmem:[#allocation7 + $0x1a4] sm:$0xf]
        %v830 = vld [vmem:[#allocation7 + $0x1a8] sm:$0xf]
        %v831 = vld [vmem:[#allocation7 + $0x1ac] sm:$0xf]
        %v832 = vld [vmem:[#allocation7 + $0x1b0] sm:$0xf]
        %v833 = vld [vmem:[#allocation7 + $0x1b4] sm:$0xf]
        %v834 = vld [vmem:[#allocation7 + $0x1b8] sm:$0xf]
        %v835 = vld [vmem:[#allocation7 + $0x1bc] sm:$0xf]
        %v836 = vld [vmem:[#allocation7 + $0x1c0] sm:$0xf]
        %v837 = vld [vmem:[#allocation7 + $0x1c4] sm:$0xf]
        %v838 = vld [vmem:[#allocation7 + $0x1c8] sm:$0xf]
        %v839 = vld [vmem:[#allocation7 + $0x1cc] sm:$0xf]
        %v840 = vld [vmem:[#allocation7 + $0x1d0] sm:$0xf]
        %v841 = vld [vmem:[#allocation7 + $0x1d4] sm:$0xf]
        %v842 = vld [vmem:[#allocation7 + $0x1d8] sm:$0xf]
        %v843 = vld [vmem:[#allocation7 + $0x1dc] sm:$0xf]
        %v844 = vld [vmem:[#allocation7 + $0x1e0] sm:$0xf]
        %v845 = vld [vmem:[#allocation7 + $0x1e4] sm:$0xf]
        %v846 = vld [vmem:[#allocation7 + $0x1e8] sm:$0xf]
        %v847 = vld [vmem:[#allocation7 + $0x1ec] sm:$0xf]
        %v848 = vld [vmem:[#allocation7 + $0x1f0] sm:$0xf]
        %v849 = vld [vmem:[#allocation7 + $0x1f4] sm:$0xf]
        %v850 = vld [vmem:[#allocation7 + $0x1f8] sm:$0xf]
        %v851 = vld [vmem:[#allocation7 + $0x1fc] sm:$0xf]
        %v852 = vld [vmem:[#allocation7 + $0x200] sm:$0xf]
        %v853 = vld [vmem:[#allocation7 + $0x204] sm:$0xf]
        %v854 = vld [vmem:[#allocation7 + $0x208] sm:$0xf]
        %v855 = vld [vmem:[#allocation7 + $0x20c] sm:$0xf]
        %v856 = vld [vmem:[#allocation7 + $0x210] sm:$0xf]
        %v857 = vld [vmem:[#allocation7 + $0x214] sm:$0xf]
        %v858 = vld [vmem:[#allocation7 + $0x218] sm:$0xf]
        %v859 = vld [vmem:[#allocation7 + $0x21c] sm:$0xf]
        %v860 = vld [vmem:[#allocation7 + $0x220] sm:$0xf]
        %v861 = vld [vmem:[#allocation7 + $0x224] sm:$0xf]
        %v862 = vld [vmem:[#allocation7 + $0x228] sm:$0xf]
        %v863 = vld [vmem:[#allocation7 + $0x22c] sm:$0xf]
        %v864 = vld [vmem:[#allocation7 + $0x230] sm:$0xf]
        %v865 = vld [vmem:[#allocation7 + $0x234] sm:$0xf]
        %v866 = vld [vmem:[#allocation7 + $0x238] sm:$0xf]
        %v867 = vld [vmem:[#allocation7 + $0x23c] sm:$0xf]
        %v868 = vld [vmem:[%s3] sm:$0x1]
        %v870 = vperm.slane %v868, 0
        %v1016 = vunpack.c.l.b16 %v724
        %v1017 = vunpack.c.l.b16 %v725
        %v1018 = vunpack.c.l.b16 %v726
        %v1019 = vunpack.c.l.b16 %v727
        %v1020 = vunpack.c.l.b16 %v728
        %v1021 = vunpack.c.l.b16 %v729
        %v1022 = vunpack.c.l.b16 %v730
        %v1023 = vunpack.c.l.b16 %v731
        %v1024 = vunpack.c.l.b16 %v732
        %v1025 = vunpack.c.l.b16 %v733
        %v1026 = vunpack.c.l.b16 %v734
        %v1027 = vunpack.c.l.b16 %v735
        %v1028 = vunpack.c.l.b16 %v736
        %v1029 = vunpack.c.l.b16 %v737
        %v1030 = vunpack.c.l.b16 %v738
        %v1031 = vunpack.c.l.b16 %v739
        %v1032 = vunpack.c.l.b16 %v740
        %v1033 = vunpack.c.l.b16 %v741
        %v1034 = vunpack.c.l.b16 %v742
        %v1035 = vunpack.c.l.b16 %v743
        %v1036 = vunpack.c.l.b16 %v744
        %v1037 = vunpack.c.l.b16 %v745
        %v1038 = vunpack.c.l.b16 %v746
        %v1039 = vunpack.c.l.b16 %v747
        %v1040 = vunpack.c.l.b16 %v748
        %v1041 = vunpack.c.l.b16 %v749
        %v1042 = vunpack.c.l.b16 %v750
        %v1043 = vunpack.c.l.b16 %v751
        %v1044 = vunpack.c.l.b16 %v752
        %v1045 = vunpack.c.l.b16 %v753
        %v1046 = vunpack.c.l.b16 %v754
        %v1047 = vunpack.c.l.b16 %v755
        %v1048 = vunpack.c.l.b16 %v756
        %v1049 = vunpack.c.l.b16 %v757
        %v1050 = vunpack.c.l.b16 %v758
        %v1051 = vunpack.c.l.b16 %v759
        %v1052 = vunpack.c.l.b16 %v760
        %v1053 = vunpack.c.l.b16 %v761
        %v1054 = vunpack.c.l.b16 %v762
        %v1055 = vunpack.c.l.b16 %v763
        %v1056 = vunpack.c.l.b16 %v764
        %v1057 = vunpack.c.l.b16 %v765
        %v1058 = vunpack.c.l.b16 %v766
        %v1059 = vunpack.c.l.b16 %v767
        %v1060 = vunpack.c.l.b16 %v768
        %v1061 = vunpack.c.l.b16 %v769
        %v1062 = vunpack.c.l.b16 %v770
        %v1063 = vunpack.c.l.b16 %v771
        %v1064 = vunpack.c.l.b16 %v772
        %v1065 = vunpack.c.l.b16 %v773
        %v1066 = vunpack.c.l.b16 %v774
        %v1067 = vunpack.c.l.b16 %v775
        %v1068 = vunpack.c.l.b16 %v776
        %v1069 = vunpack.c.l.b16 %v777
        %v1070 = vunpack.c.l.b16 %v778
        %v1071 = vunpack.c.l.b16 %v779
        %v1072 = vunpack.c.l.b16 %v780
        %v1073 = vunpack.c.l.b16 %v781
        %v1074 = vunpack.c.l.b16 %v782
        %v1075 = vunpack.c.l.b16 %v783
        %v1076 = vunpack.c.l.b16 %v784
        %v1077 = vunpack.c.l.b16 %v785
        %v1078 = vunpack.c.l.b16 %v786
        %v1079 = vunpack.c.l.b16 %v787
        %v1080 = vunpack.c.l.b16 %v788
        %v1081 = vunpack.c.l.b16 %v789
        %v1082 = vunpack.c.l.b16 %v790
        %v1083 = vunpack.c.l.b16 %v791
        %v1084 = vunpack.c.l.b16 %v792
        %v1085 = vunpack.c.l.b16 %v793
        %v1086 = vunpack.c.l.b16 %v794
        %v1087 = vunpack.c.l.b16 %v795
        %v1088 = vunpack.c.l.b16 %v796
        %v1089 = vunpack.c.l.b16 %v797
        %v1090 = vunpack.c.l.b16 %v798
        %v1091 = vunpack.c.l.b16 %v799
        %v1092 = vunpack.c.l.b16 %v800
        %v1093 = vunpack.c.l.b16 %v801
        %v1094 = vunpack.c.l.b16 %v802
        %v1095 = vunpack.c.l.b16 %v803
        %v1096 = vunpack.c.l.b16 %v804
        %v1097 = vunpack.c.l.b16 %v805
        %v1098 = vunpack.c.l.b16 %v806
        %v1099 = vunpack.c.l.b16 %v807
        %v1100 = vunpack.c.l.b16 %v808
        %v1101 = vunpack.c.l.b16 %v809
        %v1102 = vunpack.c.l.b16 %v810
        %v1103 = vunpack.c.l.b16 %v811
        %v1104 = vunpack.c.l.b16 %v812
        %v1105 = vunpack.c.l.b16 %v813
        %v1106 = vunpack.c.l.b16 %v814
        %v1107 = vunpack.c.l.b16 %v815
        %v1108 = vunpack.c.l.b16 %v816
        %v1109 = vunpack.c.l.b16 %v817
        %v1110 = vunpack.c.l.b16 %v818
        %v1111 = vunpack.c.l.b16 %v819
        %v1112 = vunpack.c.l.b16 %v820
        %v1113 = vunpack.c.l.b16 %v821
        %v1114 = vunpack.c.l.b16 %v822
        %v1115 = vunpack.c.l.b16 %v823
        %v1116 = vunpack.c.l.b16 %v824
        %v1117 = vunpack.c.l.b16 %v825
        %v1118 = vunpack.c.l.b16 %v826
        %v1119 = vunpack.c.l.b16 %v827
        %v1120 = vunpack.c.l.b16 %v828
        %v1121 = vunpack.c.l.b16 %v829
        %v1122 = vunpack.c.l.b16 %v830
        %v1123 = vunpack.c.l.b16 %v831
        %v1124 = vunpack.c.l.b16 %v832
        %v1125 = vunpack.c.l.b16 %v833
        %v1126 = vunpack.c.l.b16 %v834
        %v1127 = vunpack.c.l.b16 %v835
        %v1128 = vunpack.c.l.b16 %v836
        %v1129 = vunpack.c.l.b16 %v837
        %v1130 = vunpack.c.l.b16 %v838
        %v1131 = vunpack.c.l.b16 %v839
        %v1132 = vunpack.c.l.b16 %v840
        %v1133 = vunpack.c.l.b16 %v841
        %v1134 = vunpack.c.l.b16 %v842
        %v1135 = vunpack.c.l.b16 %v843
        %v1136 = vunpack.c.l.b16 %v844
        %v1137 = vunpack.c.l.b16 %v845
        %v1138 = vunpack.c.l.b16 %v846
        %v1139 = vunpack.c.l.b16 %v847
        %v1140 = vunpack.c.l.b16 %v848
        %v1141 = vunpack.c.l.b16 %v849
        %v1142 = vunpack.c.l.b16 %v850
        %v1143 = vunpack.c.l.b16 %v851
        %v1144 = vunpack.c.l.b16 %v852
        %v1145 = vunpack.c.l.b16 %v853
        %v1146 = vunpack.c.l.b16 %v854
        %v1147 = vunpack.c.l.b16 %v855
        %v1148 = vunpack.c.l.b16 %v856
        %v1149 = vunpack.c.l.b16 %v857
        %v1150 = vunpack.c.l.b16 %v858
        %v1151 = vunpack.c.l.b16 %v859
        %v1152 = vunpack.c.l.b16 %v860
        %v1153 = vunpack.c.l.b16 %v861
        %v1154 = vunpack.c.l.b16 %v862
        %v1155 = vunpack.c.l.b16 %v863
        %v1156 = vunpack.c.l.b16 %v864
        %v1157 = vunpack.c.l.b16 %v865
        %v1158 = vunpack.c.l.b16 %v866
        %v1159 = vunpack.c.l.b16 %v867
        %v1160 = vpack.c.b16 %v1017, %v1016
        %v1161 = vpack.c.b16 %v1019, %v1018
        %v1162 = vpack.c.b16 %v1021, %v1020
        %v1163 = vpack.c.b16 %v1023, %v1022
        %v1164 = vpack.c.b16 %v1025, %v1024
        %v1165 = vpack.c.b16 %v1027, %v1026
        %v1166 = vpack.c.b16 %v1029, %v1028
        %v1167 = vpack.c.b16 %v1031, %v1030
        %v1168 = vpack.c.b16 %v1033, %v1032
        %v1169 = vpack.c.b16 %v1035, %v1034
        %v1170 = vpack.c.b16 %v1037, %v1036
        %v1171 = vpack.c.b16 %v1039, %v1038
        %v1172 = vpack.c.b16 %v1041, %v1040
        %v1173 = vpack.c.b16 %v1043, %v1042
        %v1174 = vpack.c.b16 %v1045, %v1044
        %v1175 = vpack.c.b16 %v1047, %v1046
        %v1176 = vpack.c.b16 %v1049, %v1048
        %v1177 = vpack.c.b16 %v1051, %v1050
        %v1178 = vpack.c.b16 %v1053, %v1052
        %v1179 = vpack.c.b16 %v1055, %v1054
        %v1180 = vpack.c.b16 %v1057, %v1056
        %v1181 = vpack.c.b16 %v1059, %v1058
        %v1182 = vpack.c.b16 %v1061, %v1060
        %v1183 = vpack.c.b16 %v1063, %v1062
        %v1184 = vpack.c.b16 %v1065, %v1064
        %v1185 = vpack.c.b16 %v1067, %v1066
        %v1186 = vpack.c.b16 %v1069, %v1068
        %v1187 = vpack.c.b16 %v1071, %v1070
        %v1188 = vpack.c.b16 %v1073, %v1072
        %v1189 = vpack.c.b16 %v1075, %v1074
        %v1190 = vpack.c.b16 %v1077, %v1076
        %v1191 = vpack.c.b16 %v1079, %v1078
        %v1192 = vpack.c.b16 %v1081, %v1080
        %v1193 = vpack.c.b16 %v1083, %v1082
        %v1194 = vpack.c.b16 %v1085, %v1084
        %v1195 = vpack.c.b16 %v1087, %v1086
        %v1196 = vpack.c.b16 %v1089, %v1088
        %v1197 = vpack.c.b16 %v1091, %v1090
        %v1198 = vpack.c.b16 %v1093, %v1092
        %v1199 = vpack.c.b16 %v1095, %v1094
        %v1200 = vpack.c.b16 %v1097, %v1096
        %v1201 = vpack.c.b16 %v1099, %v1098
        %v1202 = vpack.c.b16 %v1101, %v1100
        %v1203 = vpack.c.b16 %v1103, %v1102
        %v1204 = vpack.c.b16 %v1105, %v1104
        %v1205 = vpack.c.b16 %v1107, %v1106
        %v1206 = vpack.c.b16 %v1109, %v1108
        %v1207 = vpack.c.b16 %v1111, %v1110
        %v1208 = vpack.c.b16 %v1113, %v1112
        %v1209 = vpack.c.b16 %v1115, %v1114
        %v1210 = vpack.c.b16 %v1117, %v1116
        %v1211 = vpack.c.b16 %v1119, %v1118
        %v1212 = vpack.c.b16 %v1121, %v1120
        %v1213 = vpack.c.b16 %v1123, %v1122
        %v1214 = vpack.c.b16 %v1125, %v1124
        %v1215 = vpack.c.b16 %v1127, %v1126
        %v1216 = vpack.c.b16 %v1129, %v1128
        %v1217 = vpack.c.b16 %v1131, %v1130
        %v1218 = vpack.c.b16 %v1133, %v1132
        %v1219 = vpack.c.b16 %v1135, %v1134
        %v1220 = vpack.c.b16 %v1137, %v1136
        %v1221 = vpack.c.b16 %v1139, %v1138
        %v1222 = vpack.c.b16 %v1141, %v1140
        %v1223 = vpack.c.b16 %v1143, %v1142
        %v1224 = vpack.c.b16 %v1145, %v1144
        %v1225 = vpack.c.b16 %v1147, %v1146
        %v1226 = vpack.c.b16 %v1149, %v1148
        %v1227 = vpack.c.b16 %v1151, %v1150
        %v1228 = vpack.c.b16 %v1153, %v1152
        %v1229 = vpack.c.b16 %v1155, %v1154
        %v1230 = vpack.c.b16 %v1157, %v1156
        %v1231 = vpack.c.b16 %v1159, %v1158
        %1304 = vmatpush.bf16.msra.mxu0 %v1167
        %1305 = vmatpush.bf16.msra.mxu0 %v1166
        %1306 = vmatpush.bf16.msra.mxu0 %v1165
        %1307 = vmatpush.bf16.msra.mxu0 %v1164
        %1308 = vmatpush.bf16.msra.mxu0 %v1163
        %1309 = vmatpush.bf16.msra.mxu0 %v1162
        %1310 = vmatpush.bf16.msra.mxu0 %v1161
        %1311 = vmatpush.bf16.msra.mxu0 %v1160
        %1312 = vmatmul.bf16.gmra.mxu0 %v376
        %v1313 = vpop.f32.mrf.mxu0
        %v1314 = vadd.f32 %v870, %v1313
        %v1315 = vpop.f32.mrf.mxu0
        %v1316 = vadd.f32 %v870, %v1315
        %1317 = vmatmul.bf16.gmra.mxu0 %v377
        %v1318 = vpop.f32.mrf.mxu0
        %v1319 = vadd.f32 %v870, %v1318
        %v1320 = vpop.f32.mrf.mxu0
        %v1321 = vadd.f32 %v870, %v1320
        %1322 = vmatmul.bf16.gmra.mxu0 %v378
        %v1323 = vpop.f32.mrf.mxu0
        %v1324 = vadd.f32 %v870, %v1323
        %v1325 = vpop.f32.mrf.mxu0
        %v1326 = vadd.f32 %v870, %v1325
        %1327 = vmatmul.bf16.gmra.mxu0 %v379
        %v1328 = vpop.f32.mrf.mxu0
        %v1329 = vadd.f32 %v870, %v1328
        %v1330 = vpop.f32.mrf.mxu0
        %v1331 = vadd.f32 %v870, %v1330
        %1332 = vmatmul.bf16.gmra.mxu0 %v380
        %v1333 = vpop.f32.mrf.mxu0
        %v1334 = vadd.f32 %v870, %v1333
        %v1335 = vpop.f32.mrf.mxu0
        %v1336 = vadd.f32 %v870, %v1335
        %1337 = vmatmul.bf16.gmra.mxu0 %v381
        %v1338 = vpop.f32.mrf.mxu0
        %v1339 = vadd.f32 %v870, %v1338
        %v1340 = vpop.f32.mrf.mxu0
        %v1341 = vadd.f32 %v870, %v1340
        %1342 = vmatmul.bf16.gmra.mxu0 %v382
        %v1343 = vpop.f32.mrf.mxu0
        %v1344 = vadd.f32 %v870, %v1343
        %v1345 = vpop.f32.mrf.mxu0
        %v1346 = vadd.f32 %v870, %v1345
        %1347 = vmatmul.bf16.gmra.mxu0 %v383
        %v1348 = vpop.f32.mrf.mxu0
        %v1349 = vadd.f32 %v870, %v1348
        %v1350 = vpop.f32.mrf.mxu0
        %v1351 = vadd.f32 %v870, %v1350
        %1352 = vdwg.mxu0
        %1353 = vmatpush.bf16.msra.mxu0 %v1175
        %1354 = vmatpush.bf16.msra.mxu0 %v1174
        %1355 = vmatpush.bf16.msra.mxu0 %v1173
        %1356 = vmatpush.bf16.msra.mxu0 %v1172
        %1357 = vmatpush.bf16.msra.mxu0 %v1171
        %1358 = vmatpush.bf16.msra.mxu0 %v1170
        %1359 = vmatpush.bf16.msra.mxu0 %v1169
        %1360 = vmatpush.bf16.msra.mxu0 %v1168
        %1361 = vmatmul.bf16.gmra.mxu0 %v424
        %v1362 = vpop.f32.mrf.mxu0
        %v1363 = vadd.f32 %v1314, %v1362
        %v1364 = vpop.f32.mrf.mxu0
        %v1365 = vadd.f32 %v1316, %v1364
        %1366 = vmatmul.bf16.gmra.mxu0 %v432
        %v1367 = vpop.f32.mrf.mxu0
        %v1368 = vadd.f32 %v1319, %v1367
        %v1369 = vpop.f32.mrf.mxu0
        %v1370 = vadd.f32 %v1321, %v1369
        %1371 = vmatmul.bf16.gmra.mxu0 %v440
        %v1372 = vpop.f32.mrf.mxu0
        %v1373 = vadd.f32 %v1324, %v1372
        %v1374 = vpop.f32.mrf.mxu0
        %v1375 = vadd.f32 %v1326, %v1374
        %1376 = vmatmul.bf16.gmra.mxu0 %v448
        %v1377 = vpop.f32.mrf.mxu0
        %v1378 = vadd.f32 %v1329, %v1377
        %v1379 = vpop.f32.mrf.mxu0
        %v1380 = vadd.f32 %v1331, %v1379
        %1381 = vmatmul.bf16.gmra.mxu0 %v456
        %v1382 = vpop.f32.mrf.mxu0
        %v1383 = vadd.f32 %v1334, %v1382
        %v1384 = vpop.f32.mrf.mxu0
        %v1385 = vadd.f32 %v1336, %v1384
        %1386 = vmatmul.bf16.gmra.mxu0 %v464
        %v1387 = vpop.f32.mrf.mxu0
        %v1388 = vadd.f32 %v1339, %v1387
        %v1389 = vpop.f32.mrf.mxu0
        %v1390 = vadd.f32 %v1341, %v1389
        %1391 = vmatmul.bf16.gmra.mxu0 %v472
        %v1392 = vpop.f32.mrf.mxu0
        %v1393 = vadd.f32 %v1344, %v1392
        %v1394 = vpop.f32.mrf.mxu0
        %v1395 = vadd.f32 %v1346, %v1394
        %1396 = vmatmul.bf16.gmra.mxu0 %v480
        %v1397 = vpop.f32.mrf.mxu0
        %v1398 = vadd.f32 %v1349, %v1397
        %v1399 = vpop.f32.mrf.mxu0
        %v1400 = vadd.f32 %v1351, %v1399
        %1401 = vdwg.mxu0
        %1402 = vmatpush.bf16.msra.mxu0 %v1183
        %1403 = vmatpush.bf16.msra.mxu0 %v1182
        %1404 = vmatpush.bf16.msra.mxu0 %v1181
        %1405 = vmatpush.bf16.msra.mxu0 %v1180
        %1406 = vmatpush.bf16.msra.mxu0 %v1179
        %1407 = vmatpush.bf16.msra.mxu0 %v1178
        %1408 = vmatpush.bf16.msra.mxu0 %v1177
        %1409 = vmatpush.bf16.msra.mxu0 %v1176
        %1410 = vmatmul.bf16.gmra.mxu0 %v492
        %v1411 = vpop.f32.mrf.mxu0
        %v1412 = vadd.f32 %v1363, %v1411
        %v1413 = vpop.f32.mrf.mxu0
        %v1414 = vadd.f32 %v1365, %v1413
        %1415 = vmatmul.bf16.gmra.mxu0 %v494
        %v1416 = vpop.f32.mrf.mxu0
        %v1417 = vadd.f32 %v1368, %v1416
        %v1418 = vpop.f32.mrf.mxu0
        %v1419 = vadd.f32 %v1370, %v1418
        %1420 = vmatmul.bf16.gmra.mxu0 %v496
        %v1421 = vpop.f32.mrf.mxu0
        %v1422 = vadd.f32 %v1373, %v1421
        %v1423 = vpop.f32.mrf.mxu0
        %v1424 = vadd.f32 %v1375, %v1423
        %1425 = vmatmul.bf16.gmra.mxu0 %v498
        %v1426 = vpop.f32.mrf.mxu0
        %v1427 = vadd.f32 %v1378, %v1426
        %v1428 = vpop.f32.mrf.mxu0
        %v1429 = vadd.f32 %v1380, %v1428
        %1430 = vmatmul.bf16.gmra.mxu0 %v500
        %v1431 = vpop.f32.mrf.mxu0
        %v1432 = vadd.f32 %v1383, %v1431
        %v1433 = vpop.f32.mrf.mxu0
        %v1434 = vadd.f32 %v1385, %v1433
        %1435 = vmatmul.bf16.gmra.mxu0 %v502
        %v1436 = vpop.f32.mrf.mxu0
        %v1437 = vadd.f32 %v1388, %v1436
        %v1438 = vpop.f32.mrf.mxu0
        %v1439 = vadd.f32 %v1390, %v1438
        %1440 = vmatmul.bf16.gmra.mxu0 %v504
        %v1441 = vpop.f32.mrf.mxu0
        %v1442 = vadd.f32 %v1393, %v1441
        %v1443 = vpop.f32.mrf.mxu0
        %v1444 = vadd.f32 %v1395, %v1443
        %1445 = vmatmul.bf16.gmra.mxu0 %v506
        %v1446 = vpop.f32.mrf.mxu0
        %v1447 = vadd.f32 %v1398, %v1446
        %v1448 = vpop.f32.mrf.mxu0
        %v1449 = vadd.f32 %v1400, %v1448
        %1450 = vdwg.mxu0
        %1451 = vmatpush.bf16.msra.mxu0 %v1191
        %1452 = vmatpush.bf16.msra.mxu0 %v1190
        %1453 = vmatpush.bf16.msra.mxu0 %v1189
        %1454 = vmatpush.bf16.msra.mxu0 %v1188
        %1455 = vmatpush.bf16.msra.mxu0 %v1187
        %1456 = vmatpush.bf16.msra.mxu0 %v1186
        %1457 = vmatpush.bf16.msra.mxu0 %v1185
        %1458 = vmatpush.bf16.msra.mxu0 %v1184
        %1459 = vmatmul.bf16.gmra.mxu0 %v518
        %v1460 = vpop.f32.mrf.mxu0
        %v1461 = vadd.f32 %v1412, %v1460
        %v1462 = vpop.f32.mrf.mxu0
        %v1463 = vadd.f32 %v1414, %v1462
        %1464 = vmatmul.bf16.gmra.mxu0 %v520
        %v1465 = vpop.f32.mrf.mxu0
        %v1466 = vadd.f32 %v1417, %v1465
        %v1467 = vpop.f32.mrf.mxu0
        %v1468 = vadd.f32 %v1419, %v1467
        %1469 = vmatmul.bf16.gmra.mxu0 %v522
        %v1470 = vpop.f32.mrf.mxu0
        %v1471 = vadd.f32 %v1422, %v1470
        %v1472 = vpop.f32.mrf.mxu0
        %v1473 = vadd.f32 %v1424, %v1472
        %1474 = vmatmul.bf16.gmra.mxu0 %v524
        %v1475 = vpop.f32.mrf.mxu0
        %v1476 = vadd.f32 %v1427, %v1475
        %v1477 = vpop.f32.mrf.mxu0
        %v1478 = vadd.f32 %v1429, %v1477
        %1479 = vmatmul.bf16.gmra.mxu0 %v526
        %v1480 = vpop.f32.mrf.mxu0
        %v1481 = vadd.f32 %v1432, %v1480
        %v1482 = vpop.f32.mrf.mxu0
        %v1483 = vadd.f32 %v1434, %v1482
        %1484 = vmatmul.bf16.gmra.mxu0 %v528
        %v1485 = vpop.f32.mrf.mxu0
        %v1486 = vadd.f32 %v1437, %v1485
        %v1487 = vpop.f32.mrf.mxu0
        %v1488 = vadd.f32 %v1439, %v1487
        %1489 = vmatmul.bf16.gmra.mxu0 %v530
        %v1490 = vpop.f32.mrf.mxu0
        %v1491 = vadd.f32 %v1442, %v1490
        %v1492 = vpop.f32.mrf.mxu0
        %v1493 = vadd.f32 %v1444, %v1492
        %1494 = vmatmul.bf16.gmra.mxu0 %v532
        %v1495 = vpop.f32.mrf.mxu0
        %v1496 = vadd.f32 %v1447, %v1495
        %v1497 = vpop.f32.mrf.mxu0
        %v1498 = vadd.f32 %v1449, %v1497
        %1499 = vdwg.mxu0
        %1500 = vmatpush.bf16.msra.mxu0 %v1199
        %1501 = vmatpush.bf16.msra.mxu0 %v1198
        %1502 = vmatpush.bf16.msra.mxu0 %v1197
        %1503 = vmatpush.bf16.msra.mxu0 %v1196
        %1504 = vmatpush.bf16.msra.mxu0 %v1195
        %1505 = vmatpush.bf16.msra.mxu0 %v1194
        %1506 = vmatpush.bf16.msra.mxu0 %v1193
        %1507 = vmatpush.bf16.msra.mxu0 %v1192
        %1508 = vmatmul.bf16.gmra.mxu0 %v548
        %v1509 = vpop.f32.mrf.mxu0
        %v1510 = vadd.f32 %v1461, %v1509
        %v1511 = vpop.f32.mrf.mxu0
        %v1512 = vadd.f32 %v1463, %v1511
        %1513 = vmatmul.bf16.gmra.mxu0 %v552
        %v1514 = vpop.f32.mrf.mxu0
        %v1515 = vadd.f32 %v1466, %v1514
        %v1516 = vpop.f32.mrf.mxu0
        %v1517 = vadd.f32 %v1468, %v1516
        %1518 = vmatmul.bf16.gmra.mxu0 %v556
        %v1519 = vpop.f32.mrf.mxu0
        %v1520 = vadd.f32 %v1471, %v1519
        %v1521 = vpop.f32.mrf.mxu0
        %v1522 = vadd.f32 %v1473, %v1521
        %1523 = vmatmul.bf16.gmra.mxu0 %v560
        %v1524 = vpop.f32.mrf.mxu0
        %v1525 = vadd.f32 %v1476, %v1524
        %v1526 = vpop.f32.mrf.mxu0
        %v1527 = vadd.f32 %v1478, %v1526
        %1528 = vmatmul.bf16.gmra.mxu0 %v564
        %v1529 = vpop.f32.mrf.mxu0
        %v1530 = vadd.f32 %v1481, %v1529
        %v1531 = vpop.f32.mrf.mxu0
        %v1532 = vadd.f32 %v1483, %v1531
        %1533 = vmatmul.bf16.gmra.mxu0 %v568
        %v1534 = vpop.f32.mrf.mxu0
        %v1535 = vadd.f32 %v1486, %v1534
        %v1536 = vpop.f32.mrf.mxu0
        %v1537 = vadd.f32 %v1488, %v1536
        %1538 = vmatmul.bf16.gmra.mxu0 %v574
        %v1539 = vpop.f32.mrf.mxu0
        %v1540 = vadd.f32 %v1491, %v1539
        %v1541 = vpop.f32.mrf.mxu0
        %v1542 = vadd.f32 %v1493, %v1541
        %1543 = vmatmul.bf16.gmra.mxu0 %v583
        %v1544 = vpop.f32.mrf.mxu0
        %v1545 = vadd.f32 %v1496, %v1544
        %v1546 = vpop.f32.mrf.mxu0
        %v1547 = vadd.f32 %v1498, %v1546
        %1548 = vdwg.mxu0
        %1549 = vmatpush.bf16.msra.mxu0 %v1207
        %1550 = vmatpush.bf16.msra.mxu0 %v1206
        %1551 = vmatpush.bf16.msra.mxu0 %v1205
        %1552 = vmatpush.bf16.msra.mxu0 %v1204
        %1553 = vmatpush.bf16.msra.mxu0 %v1203
        %1554 = vmatpush.bf16.msra.mxu0 %v1202
        %1555 = vmatpush.bf16.msra.mxu0 %v1201
        %1556 = vmatpush.bf16.msra.mxu0 %v1200
        %1557 = vmatmul.bf16.gmra.mxu0 %v595
        %v1558 = vpop.f32.mrf.mxu0
        %v1559 = vadd.f32 %v1510, %v1558
        %v1560 = vpop.f32.mrf.mxu0
        %v1561 = vadd.f32 %v1512, %v1560
        %1562 = vmatmul.bf16.gmra.mxu0 %v597
        %v1563 = vpop.f32.mrf.mxu0
        %v1564 = vadd.f32 %v1515, %v1563
        %v1565 = vpop.f32.mrf.mxu0
        %v1566 = vadd.f32 %v1517, %v1565
        %1567 = vmatmul.bf16.gmra.mxu0 %v599
        %v1568 = vpop.f32.mrf.mxu0
        %v1569 = vadd.f32 %v1520, %v1568
        %v1570 = vpop.f32.mrf.mxu0
        %v1571 = vadd.f32 %v1522, %v1570
        %1572 = vmatmul.bf16.gmra.mxu0 %v601
        %v1573 = vpop.f32.mrf.mxu0
        %v1574 = vadd.f32 %v1525, %v1573
        %v1575 = vpop.f32.mrf.mxu0
        %v1576 = vadd.f32 %v1527, %v1575
        %1577 = vmatmul.bf16.gmra.mxu0 %v603
        %v1578 = vpop.f32.mrf.mxu0
        %v1579 = vadd.f32 %v1530, %v1578
        %v1580 = vpop.f32.mrf.mxu0
        %v1581 = vadd.f32 %v1532, %v1580
        %1582 = vmatmul.bf16.gmra.mxu0 %v605
        %v1583 = vpop.f32.mrf.mxu0
        %v1584 = vadd.f32 %v1535, %v1583
        %v1585 = vpop.f32.mrf.mxu0
        %v1586 = vadd.f32 %v1537, %v1585
        %1587 = vmatmul.bf16.gmra.mxu0 %v607
        %v1588 = vpop.f32.mrf.mxu0
        %v1589 = vadd.f32 %v1540, %v1588
        %v1590 = vpop.f32.mrf.mxu0
        %v1591 = vadd.f32 %v1542, %v1590
        %1592 = vmatmul.bf16.gmra.mxu0 %v609
        %v1593 = vpop.f32.mrf.mxu0
        %v1594 = vadd.f32 %v1545, %v1593
        %v1595 = vpop.f32.mrf.mxu0
        %v1596 = vadd.f32 %v1547, %v1595
        %1597 = vdwg.mxu0
        %1598 = vmatpush.bf16.msra.mxu0 %v1215
        %1599 = vmatpush.bf16.msra.mxu0 %v1214
        %1600 = vmatpush.bf16.msra.mxu0 %v1213
        %1601 = vmatpush.bf16.msra.mxu0 %v1212
        %1602 = vmatpush.bf16.msra.mxu0 %v1211
        %1603 = vmatpush.bf16.msra.mxu0 %v1210
        %1604 = vmatpush.bf16.msra.mxu0 %v1209
        %1605 = vmatpush.bf16.msra.mxu0 %v1208
        %1606 = vmatmul.bf16.gmra.mxu0 %v621
        %v1607 = vpop.f32.mrf.mxu0
        %v1608 = vadd.f32 %v1559, %v1607
        %v1609 = vpop.f32.mrf.mxu0
        %v1610 = vadd.f32 %v1561, %v1609
        %1611 = vmatmul.bf16.gmra.mxu0 %v623
        %v1612 = vpop.f32.mrf.mxu0
        %v1613 = vadd.f32 %v1564, %v1612
        %v1614 = vpop.f32.mrf.mxu0
        %v1615 = vadd.f32 %v1566, %v1614
        %1616 = vmatmul.bf16.gmra.mxu0 %v625
        %v1617 = vpop.f32.mrf.mxu0
        %v1618 = vadd.f32 %v1569, %v1617
        %v1619 = vpop.f32.mrf.mxu0
        %v1620 = vadd.f32 %v1571, %v1619
        %1621 = vmatmul.bf16.gmra.mxu0 %v627
        %v1622 = vpop.f32.mrf.mxu0
        %v1623 = vadd.f32 %v1574, %v1622
        %v1624 = vpop.f32.mrf.mxu0
        %v1625 = vadd.f32 %v1576, %v1624
        %1626 = vmatmul.bf16.gmra.mxu0 %v629
        %v1627 = vpop.f32.mrf.mxu0
        %v1628 = vadd.f32 %v1579, %v1627
        %v1629 = vpop.f32.mrf.mxu0
        %v1630 = vadd.f32 %v1581, %v1629
        %1631 = vmatmul.bf16.gmra.mxu0 %v631
        %v1632 = vpop.f32.mrf.mxu0
        %v1633 = vadd.f32 %v1584, %v1632
        %v1634 = vpop.f32.mrf.mxu0
        %v1635 = vadd.f32 %v1586, %v1634
        %1636 = vmatmul.bf16.gmra.mxu0 %v633
        %v1637 = vpop.f32.mrf.mxu0
        %v1638 = vadd.f32 %v1589, %v1637
        %v1639 = vpop.f32.mrf.mxu0
        %v1640 = vadd.f32 %v1591, %v1639
        %1641 = vmatmul.bf16.gmra.mxu0 %v635
        %v1642 = vpop.f32.mrf.mxu0
        %v1643 = vadd.f32 %v1594, %v1642
        %v1644 = vpop.f32.mrf.mxu0
        %v1645 = vadd.f32 %v1596, %v1644
        %1646 = vdwg.mxu0
        %1647 = vmatpush.bf16.msra.mxu0 %v1223
        %1648 = vmatpush.bf16.msra.mxu0 %v1222
        %1649 = vmatpush.bf16.msra.mxu0 %v1221
        %1650 = vmatpush.bf16.msra.mxu0 %v1220
        %1651 = vmatpush.bf16.msra.mxu0 %v1219
        %1652 = vmatpush.bf16.msra.mxu0 %v1218
        %1653 = vmatpush.bf16.msra.mxu0 %v1217
        %1654 = vmatpush.bf16.msra.mxu0 %v1216
        %1655 = vmatmul.bf16.gmra.mxu0 %v651
        %v1656 = vpop.f32.mrf.mxu0
        %v1657 = vadd.f32 %v1608, %v1656
        %v1658 = vpop.f32.mrf.mxu0
        %v1659 = vadd.f32 %v1610, %v1658
        %1660 = vmatmul.bf16.gmra.mxu0 %v655
        %v1661 = vpop.f32.mrf.mxu0
        %v1662 = vadd.f32 %v1613, %v1661
        %v1663 = vpop.f32.mrf.mxu0
        %v1664 = vadd.f32 %v1615, %v1663
        %1665 = vmatmul.bf16.gmra.mxu0 %v659
        %v1666 = vpop.f32.mrf.mxu0
        %v1667 = vadd.f32 %v1618, %v1666
        %v1668 = vpop.f32.mrf.mxu0
        %v1669 = vadd.f32 %v1620, %v1668
        %1670 = vmatmul.bf16.gmra.mxu0 %v663
        %v1671 = vpop.f32.mrf.mxu0
        %v1672 = vadd.f32 %v1623, %v1671
        %v1673 = vpop.f32.mrf.mxu0
        %v1674 = vadd.f32 %v1625, %v1673
        %1675 = vmatmul.bf16.gmra.mxu0 %v667
        %v1676 = vpop.f32.mrf.mxu0
        %v1677 = vadd.f32 %v1628, %v1676
        %v1678 = vpop.f32.mrf.mxu0
        %v1679 = vadd.f32 %v1630, %v1678
        %1680 = vmatmul.bf16.gmra.mxu0 %v671
        %v1681 = vpop.f32.mrf.mxu0
        %v1682 = vadd.f32 %v1633, %v1681
        %v1683 = vpop.f32.mrf.mxu0
        %v1684 = vadd.f32 %v1635, %v1683
        %1685 = vmatmul.bf16.gmra.mxu0 %v680
        %v1686 = vpop.f32.mrf.mxu0
        %v1687 = vadd.f32 %v1638, %v1686
        %v1688 = vpop.f32.mrf.mxu0
        %v1689 = vadd.f32 %v1640, %v1688
        %1690 = vmatmul.bf16.gmra.mxu0 %v689
        %v1691 = vpop.f32.mrf.mxu0
        %v1692 = vadd.f32 %v1643, %v1691
        %v1693 = vpop.f32.mrf.mxu0
        %v1694 = vadd.f32 %v1645, %v1693
        %1695 = vdwg.mxu0
        %1696 = vmatpush.bf16.msra.mxu0 %v1231
        %1697 = vmatpush.bf16.msra.mxu0 %v1230
        %1698 = vmatpush.bf16.msra.mxu0 %v1229
        %1699 = vmatpush.bf16.msra.mxu0 %v1228
        %1700 = vmatpush.bf16.msra.mxu0 %v1227
        %1701 = vmatpush.bf16.msra.mxu0 %v1226
        %1702 = vmatpush.bf16.msra.mxu0 %v1225
        %1703 = vmatpush.bf16.msra.mxu0 %v1224
        %1704 = vmatmul.bf16.gmra.mxu0 %v701
        %v1705 = vpop.f32.mrf.mxu0
        %v1706 = vadd.f32 %v1657, %v1705
        %v1707 = vpop.f32.mrf.mxu0
        %v1708 = vadd.f32 %v1659, %v1707
        %1709 = vmatmul.bf16.gmra.mxu0 %v703
        %v1710 = vpop.f32.mrf.mxu0
        %v1711 = vadd.f32 %v1662, %v1710
        %v1712 = vpop.f32.mrf.mxu0
        %v1713 = vadd.f32 %v1664, %v1712
        %1714 = vmatmul.bf16.gmra.mxu0 %v705
        %v1715 = vpop.f32.mrf.mxu0
        %v1716 = vadd.f32 %v1667, %v1715
        %v1717 = vpop.f32.mrf.mxu0
        %v1718 = vadd.f32 %v1669, %v1717
        %1719 = vmatmul.bf16.gmra.mxu0 %v707
        %v1720 = vpop.f32.mrf.mxu0
        %v1721 = vadd.f32 %v1672, %v1720
        %v1722 = vpop.f32.mrf.mxu0
        %v1723 = vadd.f32 %v1674, %v1722
        %1724 = vmatmul.bf16.gmra.mxu0 %v709
        %v1725 = vpop.f32.mrf.mxu0
        %v1726 = vadd.f32 %v1677, %v1725
        %v1727 = vpop.f32.mrf.mxu0
        %v1728 = vadd.f32 %v1679, %v1727
        %1729 = vmatmul.bf16.gmra.mxu0 %v711
        %v1730 = vpop.f32.mrf.mxu0
        %v1731 = vadd.f32 %v1682, %v1730
        %v1732 = vpop.f32.mrf.mxu0
        %v1733 = vadd.f32 %v1684, %v1732
        %1734 = vmatmul.bf16.gmra.mxu0 %v713
        %v1735 = vpop.f32.mrf.mxu0
        %v1736 = vadd.f32 %v1687, %v1735
        %v1737 = vpop.f32.mrf.mxu0
        %v1738 = vadd.f32 %v1689, %v1737
        %1739 = vmatmul.bf16.gmra.mxu0 %v715
        %v1740 = vpop.f32.mrf.mxu0
        %v1741 = vadd.f32 %v1692, %v1740
        %v1742 = vpop.f32.mrf.mxu0
        %v1743 = vadd.f32 %v1694, %v1742
        %1744 = vdwg.mxu0
        %v1745 = vpack.c.bf16 %v1706, %v1706
        %v1746 = vpack.c.bf16 %v1708, %v1708
        %v1747 = vpack.c.bf16 %v1711, %v1711
        %v1748 = vpack.c.bf16 %v1713, %v1713
        %v1749 = vpack.c.bf16 %v1716, %v1716
        %v1750 = vpack.c.bf16 %v1718, %v1718
        %v1751 = vpack.c.bf16 %v1721, %v1721
        %v1752 = vpack.c.bf16 %v1723, %v1723
        %v1753 = vpack.c.bf16 %v1726, %v1726
        %v1754 = vpack.c.bf16 %v1728, %v1728
        %v1755 = vpack.c.bf16 %v1731, %v1731
        %v1756 = vpack.c.bf16 %v1733, %v1733
        %v1757 = vpack.c.bf16 %v1736, %v1736
        %v1758 = vpack.c.bf16 %v1738, %v1738
        %v1759 = vpack.c.bf16 %v1741, %v1741
        %v1760 = vpack.c.bf16 %v1743, %v1743
        %1761 = vst [vmem:[%s310] sm:$0xf] %v1745
        %1762 = vst [vmem:[%s310 + $0x4] sm:$0xf] %v1746
        %1763 = vst [vmem:[%s310 + $0x8] sm:$0xf] %v1747
        %1764 = vst [vmem:[%s310 + $0xc] sm:$0xf] %v1748
        %1765 = vst [vmem:[%s310 + $0x10] sm:$0xf] %v1749
        %1766 = vst [vmem:[%s310 + $0x14] sm:$0xf] %v1750
        %1767 = vst [vmem:[%s310 + $0x18] sm:$0xf] %v1751
        %1768 = vst [vmem:[%s310 + $0x1c] sm:$0xf] %v1752
        %1769 = vst [vmem:[%s310 + $0x20] sm:$0xf] %v1753
        %1770 = vst [vmem:[%s310 + $0x24] sm:$0xf] %v1754
        %1771 = vst [vmem:[%s310 + $0x28] sm:$0xf] %v1755
        %1772 = vst [vmem:[%s310 + $0x2c] sm:$0xf] %v1756
        %1773 = vst [vmem:[%s310 + $0x30] sm:$0xf] %v1757
        %1774 = vst [vmem:[%s310 + $0x34] sm:$0xf] %v1758
        %1775 = vst [vmem:[%s310 + $0x38] sm:$0xf] %v1759
        %1776 = vst [vmem:[%s310 + $0x3c] sm:$0xf] %v1760
        %s1777 = sand.u32 %s148, 1
        %s1778 = scalar_lea.sflag [#allocation4], %s1777
        %s1779 = sand.u32 %s148, 1
        %s1780 = smul.addr %s1779, 64
        %s1781 = scalar_lea.vmem [#allocation8], %s1780
        // Predicated region
        $region49: #{tpu_custom_call.1} parent=35 // pred_check
          %p1782 = pneg %p158
        $region50: #{tpu_custom_call.1} parent=35 // pred_check_branch
          %1784 = sbr.rel (%p1782) target = $region52
        $region51: #{tpu_custom_call.1} parent=35 // pred_region
          %s1785 = smul.u32 16, %s29
          %1787 = vsyncadd %s1778, 0
          %s1788 = smul.addr %s28, 80
          %s1789 = sadd.s32 %s1785, %s1788
          %s1790 = smul.addr %s1789, 4
          %s1791 = scalar_lea.hbm %s4, %s1790
          %s1792 = sshll.u32 %s1781, 4
          %s1793 = int_to_ptr.vmem [resolvable:$true] %s1792
          %s1794 = sshll.u32 %s1791, 4
          %s1795 = int_to_ptr.hbm [resolvable:$true] %s1794
          %1800 = dma.vmem_to_hbm [thread:$0]  %s1793, 1024, %s1795, %s1778, 64, 64, 4
        $region52: #{tpu_custom_call.1} parent=35 // pred_fallthru
          _
      $region36: #{tpu_custom_call.1} parent=5 // pred_fallthru
        _
      %p1801 = scmp.le.s32.totalorder 2, %s19
      // Predicated region
      $region53: #{tpu_custom_call.1} parent=5 // pred_check
        %p1802 = pneg %p1801
      $region54: #{tpu_custom_call.1} parent=5 // pred_check_branch
        %1804 = sbr.rel (%p1802) target = $region56
      $region55: #{tpu_custom_call.1} parent=5 // pred_region
        %s1805 = ssub.s32 %s19, 2
        // Predicated region
        $region57: #{tpu_custom_call.1} parent=55 // pred_check
          %p1806 = pneg %p164
        $region58: #{tpu_custom_call.1} parent=55 // pred_check_branch
          %1808 = sbr.rel (%p1806) target = $region60
        $region59: #{tpu_custom_call.1} parent=55 // pred_region
          %s1809 = sand.u32 %s149, 1
          %s1810 = scalar_lea.sflag [#allocation4], %s1809
          %s1811 = sand.u32 %s149, 1
          %s1812 = smul.addr %s1811, 64
          %s1813 = scalar_lea.vmem [#allocation8], %s1812
          %1815 = dma.done %s1810, 1024
        $region60: #{tpu_custom_call.1} parent=55 // pred_fallthru
          _
      $region56: #{tpu_custom_call.1} parent=5 // pred_fallthru
        _
    $region6: #{tpu_custom_call.1} parent=1 // loop_footer
      %s23 = sadd.s32 1, %s19
    $region7: #{tpu_custom_call.1} parent=1 // loop_footer_branch
      %18 = sbr.rel target = $region3
    $region8: #{tpu_custom_call.1} parent=1 // loop_exit
      _
    %1816 = vsyncpa [#allocation3], 1
    %s1817 = scalar_lea.sflag [#allocation3], 1
    %1818 = vsyncpa %s1817, 1
    %1819 = vsyncpa [#allocation6], 1
    %s1820 = scalar_lea.sflag [#allocation6], 1
    %1821 = vsyncpa %s1820, 1
    %1822 = vsyncpa [#allocation4], 1
    %s1823 = scalar_lea.sflag [#allocation4], 1
    %1824 = vsyncpa %s1823, 1

</llo_original>
